<compile_context>
chip_gen: v5e
topology: v5e:2x2
jax: 0.10.0
libtpu: 0.0.40
codegen_flags: <defaults>
</compile_context>

<pallas_src>
import jax
import jax.numpy as jnp
from jax.experimental import pallas as pl
from jax.experimental.pallas import tpu as pltpu


def _round_up(x, m):
    return (x + m - 1) // m * m


def _make_bottleneck_kernel(H, W, C1, Cm, C2, add):
    """Kernel + scratch shapes for one batch element (strip layout)."""
    Wp = W + 2                       # padded width (row pitch of the strip)
    OFF = Wp + 1                     # flat offset of pixel (0,0) in the padded frame
    L = (H - 1) * Wp + W             # strip length holding all real pixels
    Lpad = _round_up(L, 128)         # lane-dense matmul-N / epilogue width
    TAP_MAX = 2 * Wp + 2             # largest 3x3 tap offset
    XP_LEN = _round_up(TAP_MAX + Lpad, 128)            # padded-input buffer length
    MID_OFF = 128                    # aligned start of the cv1-output strip in mid_buf
    MID_LEN = _round_up(MID_OFF - OFF + TAP_MAX + Lpad, 128)

    def silu(v):
        # sigmoid denominator reciprocal on the EUP (approx) next to the exp
        return v * pl.reciprocal(1.0 + jnp.exp(-v), approx=True)

    def kernel(x_ref, w1_ref, b1_ref, w2_ref, b2_ref, mask_ref, o_ref,
               xp_buf, mid_buf):
        # ---- stage the unpadded image into a zero-framed padded-flat buffer ----
        xp_buf[...] = jnp.zeros_like(xp_buf)
        for h in range(H):
            xp_buf[:, OFF + h * Wp:OFF + h * Wp + W] = x_ref[0, :, h * W:(h + 1) * W]

        def conv9(w_ref, buf, base):
            # 3x3 conv = 9 accumulating (Cout,Cin)@(Cin,Lpad) MXU dots on shifted
            # lane-slices of the padded-flat buffer (BN scale pre-folded into w).
            acc = None
            for t in range(9):
                kh, kw = divmod(t, 3)
                off = base + kh * Wp + kw
                part = jnp.dot(w_ref[t], buf[:, off:off + Lpad],
                               preferred_element_type=jnp.float32)
                acc = part if acc is None else acc + part
            return acc

        # ---- cv1: conv + folded-BN bias + SiLU, then zero pad columns / tail ----
        y1 = silu(conv9(w1_ref, xp_buf, 0) + b1_ref[...]) * mask_ref[...]

        # place the masked strip inside a zero-framed buffer for cv2's taps
        mid_buf[...] = jnp.zeros_like(mid_buf)
        mid_buf[:, MID_OFF:MID_OFF + Lpad] = y1

        # ---- cv2: conv + folded-BN bias + SiLU ----
        y2 = silu(conv9(w2_ref, mid_buf, MID_OFF - OFF) + b2_ref[...])

        if add:  # shortcut (C1 == C2): residual read from the staged padded input
            y2 = y2 + xp_buf[:, OFF:OFF + Lpad]

        # scatter strip rows back to the dense (C2, H*W) output block
        for h in range(H):
            o_ref[0, :, h * W:(h + 1) * W] = y2[:, h * Wp:h * Wp + W].astype(o_ref.dtype)

    scratch_shapes = [
        pltpu.VMEM((C1, XP_LEN), jnp.float32),   # zero-framed padded input strip
        pltpu.VMEM((Cm, MID_LEN), jnp.float32),  # zero-framed cv1 output strip
    ]
    return kernel, Lpad, scratch_shapes


def bottleneck_forward(x_nchw, params, add=True):
    """Bottleneck forward. x_nchw: (B, C1, H, W) float32 (NCHW, like PyTorch)."""
    w1, s1, b1, w2, s2, b2 = params           # w: (3,3,Cin,Cout) HWIO, s/b: (Cout,)
    x = x_nchw.astype(jnp.float32)
    B, C1, H, W = x.shape
    Cm = w1.shape[-1]
    C2 = w2.shape[-1]
    if add:
        assert C1 == C2, "shortcut add requires c1 == c2"

    Wp = W + 2
    L = (H - 1) * Wp + W
    HW = H * W

    kernel, Lpad, scratch_shapes = _make_bottleneck_kernel(H, W, C1, Cm, C2, add)

    # Fold the BN scale into the conv weights; reorder to (tap, cout, cin) so the
    # kernel indexes one small weight matrix per tap with no lane slicing.
    w1t = jnp.transpose(w1, (0, 1, 3, 2)).reshape(9, Cm, C1) * s1.reshape(1, Cm, 1)
    w2t = jnp.transpose(w2, (0, 1, 3, 2)).reshape(9, C2, Cm) * s2.reshape(1, C2, 1)
    b1c = b1.reshape(Cm, 1)
    b2c = b2.reshape(C2, 1)

    # Precompute the strip-validity mask once (real pixel columns, first L lanes).
    s_idx = jnp.arange(Lpad, dtype=jnp.int32)
    mask = (((s_idx % Wp) < W) & (s_idx < L)).astype(jnp.float32).reshape(1, Lpad)

    xf = x.reshape(B, C1, HW)   # contiguous reshape: no extra HBM pass

    out = pl.pallas_call(
        kernel,
        out_shape=jax.ShapeDtypeStruct((B, C2, HW), jnp.float32),
        grid_spec=pltpu.PrefetchScalarGridSpec(
            num_scalar_prefetch=0,
            grid=(B,),
            in_specs=[
                pl.BlockSpec((1, C1, HW), lambda b: (b, 0, 0)),
                pl.BlockSpec((9, Cm, C1), lambda b: (0, 0, 0)),
                pl.BlockSpec((Cm, 1), lambda b: (0, 0)),
                pl.BlockSpec((9, C2, Cm), lambda b: (0, 0, 0)),
                pl.BlockSpec((C2, 1), lambda b: (0, 0)),
                pl.BlockSpec((1, Lpad), lambda b: (0, 0)),
            ],
            out_specs=pl.BlockSpec((1, C2, HW), lambda b: (b, 0, 0)),
            scratch_shapes=scratch_shapes,
        ),
        compiler_params=pltpu.CompilerParams(
            dimension_semantics=("parallel",),       # batch elements independent
            vmem_limit_bytes=32 * 1024 * 1024),
    )(xf, w1t, b1c, w2t, b2c, mask)

    return out.reshape(B, C2, H, W)


def init_params(key, c1, c2, e=0.5):
    """Deterministic synthetic parameters matching Bottleneck(c1, c2, e=0.5)."""
    c_ = int(c2 * e)
    eps = 1e-3
    keys = jax.random.split(key, 10)

    # Conv weights in HWIO layout: (kh, kw, cin, cout)
    w1 = jax.random.normal(keys[0], (3, 3, c1, c_), jnp.float32) * 0.1
    w2 = jax.random.normal(keys[1], (3, 3, c_, c2), jnp.float32) * 0.1

    def fold_bn(kg, kb, km, kv, c):
        gamma = 1.0 + 0.1 * jax.random.normal(kg, (c,), jnp.float32)
        beta = 0.1 * jax.random.normal(kb, (c,), jnp.float32)
        mean = 0.1 * jax.random.normal(km, (c,), jnp.float32)
        var = 1.0 + 0.1 * jnp.abs(jax.random.normal(kv, (c,), jnp.float32))
        scale = gamma / jnp.sqrt(var + eps)
        bias = beta - mean * scale
        return scale, bias

    s1, b1 = fold_bn(keys[2], keys[3], keys[4], keys[5], c_)
    s2, b2 = fold_bn(keys[6], keys[7], keys[8], keys[9], c2)
    return (w1, s1, b1, w2, s2, b2)


def _reference(x_nchw, params, add=True):
    """Pure-JAX reference (lax.conv) for correctness checking."""
    w1, s1, b1, w2, s2, b2 = params
    x = jnp.transpose(x_nchw, (0, 2, 3, 1))

    def conv_bn_silu(inp, w, scale, bias):
        y = jax.lax.conv_general_dilated(
            inp, w, window_strides=(1, 1), padding=((1, 1), (1, 1)),
            dimension_numbers=("NHWC", "HWIO", "NHWC"))
        y = y * scale.reshape(1, 1, 1, -1) + bias.reshape(1, 1, 1, -1)
        return y * jax.nn.sigmoid(y)

    y = conv_bn_silu(conv_bn_silu(x, w1, s1, b1), w2, s2, b2)
    if add:
        y = y + x
    return jnp.transpose(y, (0, 3, 1, 2))


if __name__ == "__main__":
    # Bottleneck(c1=8, c2=8, shortcut=True, e=0.5) -> c_ = 4, residual add active.
    B, C1, H, W = 2, 8, 16, 16
    C2 = 8

    key = jax.random.PRNGKey(0)
    kx, kp = jax.random.split(key)
    x = jax.random.normal(kx, (B, C1, H, W), jnp.float32)
    params = init_params(kp, C1, C2, e=0.5)

    fwd = jax.jit(lambda xx, pp: bottleneck_forward(xx, pp, add=True))
    out = fwd(x, params)
    out = jax.block_until_ready(out)

    ref = _reference(x, params, add=True)
    assert out.shape == (B, C2, H, W)
    # Slightly looser tolerance than pure-f32: SiLU uses the EUP approx reciprocal.
    err = float(jnp.max(jnp.abs(out - ref)))
    assert jnp.allclose(out, ref, atol=2e-3, rtol=2e-3), f"mismatch vs reference (max abs err {err})"

    print("KERNEL_OK")
</pallas_src>

<mosaic_0001>
module attributes {stable_mosaic.version = 11 : i64} {
  func.func @kernel(%arg0: i32, %arg1: memref<1x8x256xf32, #tpu.memory_space<vmem>>, %arg2: memref<9x4x8xf32, #tpu.memory_space<vmem>>, %arg3: memref<4x1xf32, #tpu.memory_space<vmem>>, %arg4: memref<9x8x4xf32, #tpu.memory_space<vmem>>, %arg5: memref<8x1xf32, #tpu.memory_space<vmem>>, %arg6: memref<1x384xf32, #tpu.memory_space<vmem>>, %arg7: memref<1x8x256xf32, #tpu.memory_space<vmem>>, %arg8: memref<8x512xf32, #tpu.memory_space<vmem>>, %arg9: memref<4x640xf32, #tpu.memory_space<vmem>>) attributes {dimension_semantics = [#tpu.dimension_semantics<parallel>], iteration_bounds = array<i64: 2>, scalar_prefetch = 0 : i64, scratch_operands = 2 : i64, tpu.core_type = #tpu.core_type<tc>, window_params = [{transform_indices = @transform_0, window_bounds = array<i64: 1, 8, 256>}, {pipeline_mode = #tpu.pipeline_mode<synchronous>, transform_indices = @transform_1, window_bounds = array<i64: 9, 4, 8>}, {pipeline_mode = #tpu.pipeline_mode<synchronous>, transform_indices = @transform_2, window_bounds = array<i64: 4, 1>}, {pipeline_mode = #tpu.pipeline_mode<synchronous>, transform_indices = @transform_3, window_bounds = array<i64: 9, 8, 4>}, {pipeline_mode = #tpu.pipeline_mode<synchronous>, transform_indices = @transform_4, window_bounds = array<i64: 8, 1>}, {pipeline_mode = #tpu.pipeline_mode<synchronous>, transform_indices = @transform_5, window_bounds = array<i64: 1, 384>}, {transform_indices = @transform_6, window_bounds = array<i64: 1, 8, 256>}]} {
    %cst = arith.constant 0.000000e+00 : f32
    %0 = vector.broadcast %cst : f32 to vector<8x512xf32>
    %c0 = arith.constant 0 : index
    %c0_0 = arith.constant 0 : index
    %1 = vector.load %arg8[%c0, %c0_0] : memref<8x512xf32, #tpu.memory_space<vmem>>, vector<8x512xf32>
    tpu.vector_store %arg8[%c0, %c0_0], %0 {strides = array<i32>} : memref<8x512xf32, #tpu.memory_space<vmem>>, vector<8x512xf32>,
    %c0_1 = arith.constant 0 : index
    %c0_2 = arith.constant 0 : index
    %c0_3 = arith.constant 0 : index
    %2 = vector.load %arg1[%c0_1, %c0_2, %c0_3] : memref<1x8x256xf32, #tpu.memory_space<vmem>>, vector<1x8x16xf32>
    %3 = vector.shape_cast %2 : vector<1x8x16xf32> to vector<8x16xf32>
    %c0_4 = arith.constant 0 : index
    %c19 = arith.constant 19 : index
    %4 = vector.load %arg8[%c0_4, %c19] : memref<8x512xf32, #tpu.memory_space<vmem>>, vector<8x16xf32>
    tpu.vector_store %arg8[%c0_4, %c19], %3 {strides = array<i32>} : memref<8x512xf32, #tpu.memory_space<vmem>>, vector<8x16xf32>,
    %c0_5 = arith.constant 0 : index
    %c0_6 = arith.constant 0 : index
    %c16 = arith.constant 16 : index
    %5 = vector.load %arg1[%c0_5, %c0_6, %c16] : memref<1x8x256xf32, #tpu.memory_space<vmem>>, vector<1x8x16xf32>
    %6 = vector.shape_cast %5 : vector<1x8x16xf32> to vector<8x16xf32>
    %c0_7 = arith.constant 0 : index
    %c37 = arith.constant 37 : index
    %7 = vector.load %arg8[%c0_7, %c37] : memref<8x512xf32, #tpu.memory_space<vmem>>, vector<8x16xf32>
    tpu.vector_store %arg8[%c0_7, %c37], %6 {strides = array<i32>} : memref<8x512xf32, #tpu.memory_space<vmem>>, vector<8x16xf32>,
    %c0_8 = arith.constant 0 : index
    %c0_9 = arith.constant 0 : index
    %c32 = arith.constant 32 : index
    %8 = vector.load %arg1[%c0_8, %c0_9, %c32] : memref<1x8x256xf32, #tpu.memory_space<vmem>>, vector<1x8x16xf32>
    %9 = vector.shape_cast %8 : vector<1x8x16xf32> to vector<8x16xf32>
    %c0_10 = arith.constant 0 : index
    %c55 = arith.constant 55 : index
    %10 = vector.load %arg8[%c0_10, %c55] : memref<8x512xf32, #tpu.memory_space<vmem>>, vector<8x16xf32>
    tpu.vector_store %arg8[%c0_10, %c55], %9 {strides = array<i32>} : memref<8x512xf32, #tpu.memory_space<vmem>>, vector<8x16xf32>,
    %c0_11 = arith.constant 0 : index
    %c0_12 = arith.constant 0 : index
    %c48 = arith.constant 48 : index
    %11 = vector.load %arg1[%c0_11, %c0_12, %c48] : memref<1x8x256xf32, #tpu.memory_space<vmem>>, vector<1x8x16xf32>
    %12 = vector.shape_cast %11 : vector<1x8x16xf32> to vector<8x16xf32>
    %c0_13 = arith.constant 0 : index
    %c73 = arith.constant 73 : index
    %13 = vector.load %arg8[%c0_13, %c73] : memref<8x512xf32, #tpu.memory_space<vmem>>, vector<8x16xf32>
    tpu.vector_store %arg8[%c0_13, %c73], %12 {strides = array<i32>} : memref<8x512xf32, #tpu.memory_space<vmem>>, vector<8x16xf32>,
    %c0_14 = arith.constant 0 : index
    %c0_15 = arith.constant 0 : index
    %c64 = arith.constant 64 : index
    %14 = vector.load %arg1[%c0_14, %c0_15, %c64] : memref<1x8x256xf32, #tpu.memory_space<vmem>>, vector<1x8x16xf32>
    %15 = vector.shape_cast %14 : vector<1x8x16xf32> to vector<8x16xf32>
    %c0_16 = arith.constant 0 : index
    %c91 = arith.constant 91 : index
    %16 = vector.load %arg8[%c0_16, %c91] : memref<8x512xf32, #tpu.memory_space<vmem>>, vector<8x16xf32>
    tpu.vector_store %arg8[%c0_16, %c91], %15 {strides = array<i32>} : memref<8x512xf32, #tpu.memory_space<vmem>>, vector<8x16xf32>,
    %c0_17 = arith.constant 0 : index
    %c0_18 = arith.constant 0 : index
    %c80 = arith.constant 80 : index
    %17 = vector.load %arg1[%c0_17, %c0_18, %c80] : memref<1x8x256xf32, #tpu.memory_space<vmem>>, vector<1x8x16xf32>
    %18 = vector.shape_cast %17 : vector<1x8x16xf32> to vector<8x16xf32>
    %c0_19 = arith.constant 0 : index
    %c109 = arith.constant 109 : index
    %19 = vector.load %arg8[%c0_19, %c109] : memref<8x512xf32, #tpu.memory_space<vmem>>, vector<8x16xf32>
    tpu.vector_store %arg8[%c0_19, %c109], %18 {strides = array<i32>} : memref<8x512xf32, #tpu.memory_space<vmem>>, vector<8x16xf32>,
    %c0_20 = arith.constant 0 : index
    %c0_21 = arith.constant 0 : index
    %c96 = arith.constant 96 : index
    %20 = vector.load %arg1[%c0_20, %c0_21, %c96] : memref<1x8x256xf32, #tpu.memory_space<vmem>>, vector<1x8x16xf32>
    %21 = vector.shape_cast %20 : vector<1x8x16xf32> to vector<8x16xf32>
    %c0_22 = arith.constant 0 : index
    %c127 = arith.constant 127 : index
    %22 = vector.load %arg8[%c0_22, %c127] : memref<8x512xf32, #tpu.memory_space<vmem>>, vector<8x16xf32>
    tpu.vector_store %arg8[%c0_22, %c127], %21 {strides = array<i32>} : memref<8x512xf32, #tpu.memory_space<vmem>>, vector<8x16xf32>,
    %c0_23 = arith.constant 0 : index
    %c0_24 = arith.constant 0 : index
    %c112 = arith.constant 112 : index
    %23 = vector.load %arg1[%c0_23, %c0_24, %c112] : memref<1x8x256xf32, #tpu.memory_space<vmem>>, vector<1x8x16xf32>
    %24 = vector.shape_cast %23 : vector<1x8x16xf32> to vector<8x16xf32>
    %c0_25 = arith.constant 0 : index
    %c145 = arith.constant 145 : index
    %25 = vector.load %arg8[%c0_25, %c145] : memref<8x512xf32, #tpu.memory_space<vmem>>, vector<8x16xf32>
    tpu.vector_store %arg8[%c0_25, %c145], %24 {strides = array<i32>} : memref<8x512xf32, #tpu.memory_space<vmem>>, vector<8x16xf32>,
    %c0_26 = arith.constant 0 : index
    %c0_27 = arith.constant 0 : index
    %c128 = arith.constant 128 : index
    %26 = vector.load %arg1[%c0_26, %c0_27, %c128] : memref<1x8x256xf32, #tpu.memory_space<vmem>>, vector<1x8x16xf32>
    %27 = vector.shape_cast %26 : vector<1x8x16xf32> to vector<8x16xf32>
    %c0_28 = arith.constant 0 : index
    %c163 = arith.constant 163 : index
    %28 = vector.load %arg8[%c0_28, %c163] : memref<8x512xf32, #tpu.memory_space<vmem>>, vector<8x16xf32>
    tpu.vector_store %arg8[%c0_28, %c163], %27 {strides = array<i32>} : memref<8x512xf32, #tpu.memory_space<vmem>>, vector<8x16xf32>,
    %c0_29 = arith.constant 0 : index
    %c0_30 = arith.constant 0 : index
    %c144 = arith.constant 144 : index
    %29 = vector.load %arg1[%c0_29, %c0_30, %c144] : memref<1x8x256xf32, #tpu.memory_space<vmem>>, vector<1x8x16xf32>
    %30 = vector.shape_cast %29 : vector<1x8x16xf32> to vector<8x16xf32>
    %c0_31 = arith.constant 0 : index
    %c181 = arith.constant 181 : index
    %31 = vector.load %arg8[%c0_31, %c181] : memref<8x512xf32, #tpu.memory_space<vmem>>, vector<8x16xf32>
    tpu.vector_store %arg8[%c0_31, %c181], %30 {strides = array<i32>} : memref<8x512xf32, #tpu.memory_space<vmem>>, vector<8x16xf32>,
    %c0_32 = arith.constant 0 : index
    %c0_33 = arith.constant 0 : index
    %c160 = arith.constant 160 : index
    %32 = vector.load %arg1[%c0_32, %c0_33, %c160] : memref<1x8x256xf32, #tpu.memory_space<vmem>>, vector<1x8x16xf32>
    %33 = vector.shape_cast %32 : vector<1x8x16xf32> to vector<8x16xf32>
    %c0_34 = arith.constant 0 : index
    %c199 = arith.constant 199 : index
    %34 = vector.load %arg8[%c0_34, %c199] : memref<8x512xf32, #tpu.memory_space<vmem>>, vector<8x16xf32>
    tpu.vector_store %arg8[%c0_34, %c199], %33 {strides = array<i32>} : memref<8x512xf32, #tpu.memory_space<vmem>>, vector<8x16xf32>,
    %c0_35 = arith.constant 0 : index
    %c0_36 = arith.constant 0 : index
    %c176 = arith.constant 176 : index
    %35 = vector.load %arg1[%c0_35, %c0_36, %c176] : memref<1x8x256xf32, #tpu.memory_space<vmem>>, vector<1x8x16xf32>
    %36 = vector.shape_cast %35 : vector<1x8x16xf32> to vector<8x16xf32>
    %c0_37 = arith.constant 0 : index
    %c217 = arith.constant 217 : index
    %37 = vector.load %arg8[%c0_37, %c217] : memref<8x512xf32, #tpu.memory_space<vmem>>, vector<8x16xf32>
    tpu.vector_store %arg8[%c0_37, %c217], %36 {strides = array<i32>} : memref<8x512xf32, #tpu.memory_space<vmem>>, vector<8x16xf32>,
    %c0_38 = arith.constant 0 : index
    %c0_39 = arith.constant 0 : index
    %c192 = arith.constant 192 : index
    %38 = vector.load %arg1[%c0_38, %c0_39, %c192] : memref<1x8x256xf32, #tpu.memory_space<vmem>>, vector<1x8x16xf32>
    %39 = vector.shape_cast %38 : vector<1x8x16xf32> to vector<8x16xf32>
    %c0_40 = arith.constant 0 : index
    %c235 = arith.constant 235 : index
    %40 = vector.load %arg8[%c0_40, %c235] : memref<8x512xf32, #tpu.memory_space<vmem>>, vector<8x16xf32>
    tpu.vector_store %arg8[%c0_40, %c235], %39 {strides = array<i32>} : memref<8x512xf32, #tpu.memory_space<vmem>>, vector<8x16xf32>,
    %c0_41 = arith.constant 0 : index
    %c0_42 = arith.constant 0 : index
    %c208 = arith.constant 208 : index
    %41 = vector.load %arg1[%c0_41, %c0_42, %c208] : memref<1x8x256xf32, #tpu.memory_space<vmem>>, vector<1x8x16xf32>
    %42 = vector.shape_cast %41 : vector<1x8x16xf32> to vector<8x16xf32>
    %c0_43 = arith.constant 0 : index
    %c253 = arith.constant 253 : index
    %43 = vector.load %arg8[%c0_43, %c253] : memref<8x512xf32, #tpu.memory_space<vmem>>, vector<8x16xf32>
    tpu.vector_store %arg8[%c0_43, %c253], %42 {strides = array<i32>} : memref<8x512xf32, #tpu.memory_space<vmem>>, vector<8x16xf32>,
    %c0_44 = arith.constant 0 : index
    %c0_45 = arith.constant 0 : index
    %c224 = arith.constant 224 : index
    %44 = vector.load %arg1[%c0_44, %c0_45, %c224] : memref<1x8x256xf32, #tpu.memory_space<vmem>>, vector<1x8x16xf32>
    %45 = vector.shape_cast %44 : vector<1x8x16xf32> to vector<8x16xf32>
    %c0_46 = arith.constant 0 : index
    %c271 = arith.constant 271 : index
    %46 = vector.load %arg8[%c0_46, %c271] : memref<8x512xf32, #tpu.memory_space<vmem>>, vector<8x16xf32>
    tpu.vector_store %arg8[%c0_46, %c271], %45 {strides = array<i32>} : memref<8x512xf32, #tpu.memory_space<vmem>>, vector<8x16xf32>,
    %c0_47 = arith.constant 0 : index
    %c0_48 = arith.constant 0 : index
    %c240 = arith.constant 240 : index
    %47 = vector.load %arg1[%c0_47, %c0_48, %c240] : memref<1x8x256xf32, #tpu.memory_space<vmem>>, vector<1x8x16xf32>
    %48 = vector.shape_cast %47 : vector<1x8x16xf32> to vector<8x16xf32>
    %c0_49 = arith.constant 0 : index
    %c289 = arith.constant 289 : index
    %49 = vector.load %arg8[%c0_49, %c289] : memref<8x512xf32, #tpu.memory_space<vmem>>, vector<8x16xf32>
    tpu.vector_store %arg8[%c0_49, %c289], %48 {strides = array<i32>} : memref<8x512xf32, #tpu.memory_space<vmem>>, vector<8x16xf32>,
    %c0_50 = arith.constant 0 : index
    %c0_51 = arith.constant 0 : index
    %c0_52 = arith.constant 0 : index
    %50 = vector.load %arg2[%c0_50, %c0_51, %c0_52] : memref<9x4x8xf32, #tpu.memory_space<vmem>>, vector<1x4x8xf32>
    %51 = vector.shape_cast %50 : vector<1x4x8xf32> to vector<4x8xf32>
    %c0_53 = arith.constant 0 : index
    %c0_54 = arith.constant 0 : index
    %52 = vector.load %arg8[%c0_53, %c0_54] : memref<8x512xf32, #tpu.memory_space<vmem>>, vector<8x384xf32>
    %cst_55 = arith.constant dense<0.000000e+00> : vector<4x384xf32>
    %53 = tpu.matmul %51, %52, %cst_55 {dimension_numbers = #tpu.dot_dimension_numbers<[1], [0], [0], [1], [0, 0, 1, 1], [], []>} : vector<4x8xf32>, vector<8x384xf32>, vector<4x384xf32> -> vector<4x384xf32>
    %c1 = arith.constant 1 : index
    %c0_56 = arith.constant 0 : index
    %c0_57 = arith.constant 0 : index
    %54 = vector.load %arg2[%c1, %c0_56, %c0_57] : memref<9x4x8xf32, #tpu.memory_space<vmem>>, vector<1x4x8xf32>
    %55 = vector.shape_cast %54 : vector<1x4x8xf32> to vector<4x8xf32>
    %c0_58 = arith.constant 0 : index
    %c1_59 = arith.constant 1 : index
    %56 = vector.load %arg8[%c0_58, %c1_59] : memref<8x512xf32, #tpu.memory_space<vmem>>, vector<8x384xf32>
    %cst_60 = arith.constant dense<0.000000e+00> : vector<4x384xf32>
    %57 = tpu.matmul %55, %56, %cst_60 {dimension_numbers = #tpu.dot_dimension_numbers<[1], [0], [0], [1], [0, 0, 1, 1], [], []>} : vector<4x8xf32>, vector<8x384xf32>, vector<4x384xf32> -> vector<4x384xf32>
    %58 = arith.addf %53, %57 : vector<4x384xf32>
    %c2 = arith.constant 2 : index
    %c0_61 = arith.constant 0 : index
    %c0_62 = arith.constant 0 : index
    %59 = vector.load %arg2[%c2, %c0_61, %c0_62] : memref<9x4x8xf32, #tpu.memory_space<vmem>>, vector<1x4x8xf32>
    %60 = vector.shape_cast %59 : vector<1x4x8xf32> to vector<4x8xf32>
    %c0_63 = arith.constant 0 : index
    %c2_64 = arith.constant 2 : index
    %61 = vector.load %arg8[%c0_63, %c2_64] : memref<8x512xf32, #tpu.memory_space<vmem>>, vector<8x384xf32>
    %cst_65 = arith.constant dense<0.000000e+00> : vector<4x384xf32>
    %62 = tpu.matmul %60, %61, %cst_65 {dimension_numbers = #tpu.dot_dimension_numbers<[1], [0], [0], [1], [0, 0, 1, 1], [], []>} : vector<4x8xf32>, vector<8x384xf32>, vector<4x384xf32> -> vector<4x384xf32>
    %63 = arith.addf %58, %62 : vector<4x384xf32>
    %c3 = arith.constant 3 : index
    %c0_66 = arith.constant 0 : index
    %c0_67 = arith.constant 0 : index
    %64 = vector.load %arg2[%c3, %c0_66, %c0_67] : memref<9x4x8xf32, #tpu.memory_space<vmem>>, vector<1x4x8xf32>
    %65 = vector.shape_cast %64 : vector<1x4x8xf32> to vector<4x8xf32>
    %c0_68 = arith.constant 0 : index
    %c18 = arith.constant 18 : index
    %66 = vector.load %arg8[%c0_68, %c18] : memref<8x512xf32, #tpu.memory_space<vmem>>, vector<8x384xf32>
    %cst_69 = arith.constant dense<0.000000e+00> : vector<4x384xf32>
    %67 = tpu.matmul %65, %66, %cst_69 {dimension_numbers = #tpu.dot_dimension_numbers<[1], [0], [0], [1], [0, 0, 1, 1], [], []>} : vector<4x8xf32>, vector<8x384xf32>, vector<4x384xf32> -> vector<4x384xf32>
    %68 = arith.addf %63, %67 : vector<4x384xf32>
    %c4 = arith.constant 4 : index
    %c0_70 = arith.constant 0 : index
    %c0_71 = arith.constant 0 : index
    %69 = vector.load %arg2[%c4, %c0_70, %c0_71] : memref<9x4x8xf32, #tpu.memory_space<vmem>>, vector<1x4x8xf32>
    %70 = vector.shape_cast %69 : vector<1x4x8xf32> to vector<4x8xf32>
    %c0_72 = arith.constant 0 : index
    %c19_73 = arith.constant 19 : index
    %71 = vector.load %arg8[%c0_72, %c19_73] : memref<8x512xf32, #tpu.memory_space<vmem>>, vector<8x384xf32>
    %cst_74 = arith.constant dense<0.000000e+00> : vector<4x384xf32>
    %72 = tpu.matmul %70, %71, %cst_74 {dimension_numbers = #tpu.dot_dimension_numbers<[1], [0], [0], [1], [0, 0, 1, 1], [], []>} : vector<4x8xf32>, vector<8x384xf32>, vector<4x384xf32> -> vector<4x384xf32>
    %73 = arith.addf %68, %72 : vector<4x384xf32>
    %c5 = arith.constant 5 : index
    %c0_75 = arith.constant 0 : index
    %c0_76 = arith.constant 0 : index
    %74 = vector.load %arg2[%c5, %c0_75, %c0_76] : memref<9x4x8xf32, #tpu.memory_space<vmem>>, vector<1x4x8xf32>
    %75 = vector.shape_cast %74 : vector<1x4x8xf32> to vector<4x8xf32>
    %c0_77 = arith.constant 0 : index
    %c20 = arith.constant 20 : index
    %76 = vector.load %arg8[%c0_77, %c20] : memref<8x512xf32, #tpu.memory_space<vmem>>, vector<8x384xf32>
    %cst_78 = arith.constant dense<0.000000e+00> : vector<4x384xf32>
    %77 = tpu.matmul %75, %76, %cst_78 {dimension_numbers = #tpu.dot_dimension_numbers<[1], [0], [0], [1], [0, 0, 1, 1], [], []>} : vector<4x8xf32>, vector<8x384xf32>, vector<4x384xf32> -> vector<4x384xf32>
    %78 = arith.addf %73, %77 : vector<4x384xf32>
    %c6 = arith.constant 6 : index
    %c0_79 = arith.constant 0 : index
    %c0_80 = arith.constant 0 : index
    %79 = vector.load %arg2[%c6, %c0_79, %c0_80] : memref<9x4x8xf32, #tpu.memory_space<vmem>>, vector<1x4x8xf32>
    %80 = vector.shape_cast %79 : vector<1x4x8xf32> to vector<4x8xf32>
    %c0_81 = arith.constant 0 : index
    %c36 = arith.constant 36 : index
    %81 = vector.load %arg8[%c0_81, %c36] : memref<8x512xf32, #tpu.memory_space<vmem>>, vector<8x384xf32>
    %cst_82 = arith.constant dense<0.000000e+00> : vector<4x384xf32>
    %82 = tpu.matmul %80, %81, %cst_82 {dimension_numbers = #tpu.dot_dimension_numbers<[1], [0], [0], [1], [0, 0, 1, 1], [], []>} : vector<4x8xf32>, vector<8x384xf32>, vector<4x384xf32> -> vector<4x384xf32>
    %83 = arith.addf %78, %82 : vector<4x384xf32>
    %c7 = arith.constant 7 : index
    %c0_83 = arith.constant 0 : index
    %c0_84 = arith.constant 0 : index
    %84 = vector.load %arg2[%c7, %c0_83, %c0_84] : memref<9x4x8xf32, #tpu.memory_space<vmem>>, vector<1x4x8xf32>
    %85 = vector.shape_cast %84 : vector<1x4x8xf32> to vector<4x8xf32>
    %c0_85 = arith.constant 0 : index
    %c37_86 = arith.constant 37 : index
    %86 = vector.load %arg8[%c0_85, %c37_86] : memref<8x512xf32, #tpu.memory_space<vmem>>, vector<8x384xf32>
    %cst_87 = arith.constant dense<0.000000e+00> : vector<4x384xf32>
    %87 = tpu.matmul %85, %86, %cst_87 {dimension_numbers = #tpu.dot_dimension_numbers<[1], [0], [0], [1], [0, 0, 1, 1], [], []>} : vector<4x8xf32>, vector<8x384xf32>, vector<4x384xf32> -> vector<4x384xf32>
    %88 = arith.addf %83, %87 : vector<4x384xf32>
    %c8 = arith.constant 8 : index
    %c0_88 = arith.constant 0 : index
    %c0_89 = arith.constant 0 : index
    %89 = vector.load %arg2[%c8, %c0_88, %c0_89] : memref<9x4x8xf32, #tpu.memory_space<vmem>>, vector<1x4x8xf32>
    %90 = vector.shape_cast %89 : vector<1x4x8xf32> to vector<4x8xf32>
    %c0_90 = arith.constant 0 : index
    %c38 = arith.constant 38 : index
    %91 = vector.load %arg8[%c0_90, %c38] : memref<8x512xf32, #tpu.memory_space<vmem>>, vector<8x384xf32>
    %cst_91 = arith.constant dense<0.000000e+00> : vector<4x384xf32>
    %92 = tpu.matmul %90, %91, %cst_91 {dimension_numbers = #tpu.dot_dimension_numbers<[1], [0], [0], [1], [0, 0, 1, 1], [], []>} : vector<4x8xf32>, vector<8x384xf32>, vector<4x384xf32> -> vector<4x384xf32>
    %93 = arith.addf %88, %92 : vector<4x384xf32>
    %c0_92 = arith.constant 0 : index
    %c0_93 = arith.constant 0 : index
    %94 = vector.load %arg3[%c0_92, %c0_93] : memref<4x1xf32, #tpu.memory_space<vmem>>, vector<4x1xf32>
    %95 = vector.broadcast %94 : vector<4x1xf32> to vector<4x384xf32>
    %96 = arith.addf %93, %95 : vector<4x384xf32>
    %cst_94 = arith.constant 0.000000e+00 : f32
    %97 = vector.broadcast %cst_94 : f32 to vector<4x384xf32>
    %98 = arith.subf %97, %96 : vector<4x384xf32>
    %99 = math.exp %98 : vector<4x384xf32>
    %cst_95 = arith.constant 1.000000e+00 : f32
    %100 = vector.broadcast %cst_95 : f32 to vector<4x384xf32>
    %101 = arith.addf %100, %99 : vector<4x384xf32>
    %102 = tpu.reciprocal %101 {approx = true} : vector<4x384xf32> -> vector<4x384xf32>
    %103 = arith.mulf %96, %102 : vector<4x384xf32>
    %c0_96 = arith.constant 0 : index
    %c0_97 = arith.constant 0 : index
    %104 = vector.load %arg6[%c0_96, %c0_97] : memref<1x384xf32, #tpu.memory_space<vmem>>, vector<1x384xf32>
    %105 = vector.broadcast %104 : vector<1x384xf32> to vector<4x384xf32>
    %106 = arith.mulf %103, %105 : vector<4x384xf32>
    %cst_98 = arith.constant 0.000000e+00 : f32
    %107 = vector.broadcast %cst_98 : f32 to vector<4x640xf32>
    %c0_99 = arith.constant 0 : index
    %c0_100 = arith.constant 0 : index
    %108 = vector.load %arg9[%c0_99, %c0_100] : memref<4x640xf32, #tpu.memory_space<vmem>>, vector<4x640xf32>
    tpu.vector_store %arg9[%c0_99, %c0_100], %107 {strides = array<i32>} : memref<4x640xf32, #tpu.memory_space<vmem>>, vector<4x640xf32>,
    %c0_101 = arith.constant 0 : index
    %c128_102 = arith.constant 128 : index
    %109 = vector.load %arg9[%c0_101, %c128_102] : memref<4x640xf32, #tpu.memory_space<vmem>>, vector<4x384xf32>
    tpu.vector_store %arg9[%c0_101, %c128_102], %106 {strides = array<i32>} : memref<4x640xf32, #tpu.memory_space<vmem>>, vector<4x384xf32>,
    %c0_103 = arith.constant 0 : index
    %c0_104 = arith.constant 0 : index
    %c0_105 = arith.constant 0 : index
    %110 = vector.load %arg4[%c0_103, %c0_104, %c0_105] : memref<9x8x4xf32, #tpu.memory_space<vmem>>, vector<1x8x4xf32>
    %111 = vector.shape_cast %110 : vector<1x8x4xf32> to vector<8x4xf32>
    %c0_106 = arith.constant 0 : index
    %c109_107 = arith.constant 109 : index
    %112 = vector.load %arg9[%c0_106, %c109_107] : memref<4x640xf32, #tpu.memory_space<vmem>>, vector<4x384xf32>
    %cst_108 = arith.constant dense<0.000000e+00> : vector<8x384xf32>
    %113 = tpu.matmul %111, %112, %cst_108 {dimension_numbers = #tpu.dot_dimension_numbers<[1], [0], [0], [1], [0, 0, 1, 1], [], []>} : vector<8x4xf32>, vector<4x384xf32>, vector<8x384xf32> -> vector<8x384xf32>
    %c1_109 = arith.constant 1 : index
    %c0_110 = arith.constant 0 : index
    %c0_111 = arith.constant 0 : index
    %114 = vector.load %arg4[%c1_109, %c0_110, %c0_111] : memref<9x8x4xf32, #tpu.memory_space<vmem>>, vector<1x8x4xf32>
    %115 = vector.shape_cast %114 : vector<1x8x4xf32> to vector<8x4xf32>
    %c0_112 = arith.constant 0 : index
    %c110 = arith.constant 110 : index
    %116 = vector.load %arg9[%c0_112, %c110] : memref<4x640xf32, #tpu.memory_space<vmem>>, vector<4x384xf32>
    %cst_113 = arith.constant dense<0.000000e+00> : vector<8x384xf32>
    %117 = tpu.matmul %115, %116, %cst_113 {dimension_numbers = #tpu.dot_dimension_numbers<[1], [0], [0], [1], [0, 0, 1, 1], [], []>} : vector<8x4xf32>, vector<4x384xf32>, vector<8x384xf32> -> vector<8x384xf32>
    %118 = arith.addf %113, %117 : vector<8x384xf32>
    %c2_114 = arith.constant 2 : index
    %c0_115 = arith.constant 0 : index
    %c0_116 = arith.constant 0 : index
    %119 = vector.load %arg4[%c2_114, %c0_115, %c0_116] : memref<9x8x4xf32, #tpu.memory_space<vmem>>, vector<1x8x4xf32>
    %120 = vector.shape_cast %119 : vector<1x8x4xf32> to vector<8x4xf32>
    %c0_117 = arith.constant 0 : index
    %c111 = arith.constant 111 : index
    %121 = vector.load %arg9[%c0_117, %c111] : memref<4x640xf32, #tpu.memory_space<vmem>>, vector<4x384xf32>
    %cst_118 = arith.constant dense<0.000000e+00> : vector<8x384xf32>
    %122 = tpu.matmul %120, %121, %cst_118 {dimension_numbers = #tpu.dot_dimension_numbers<[1], [0], [0], [1], [0, 0, 1, 1], [], []>} : vector<8x4xf32>, vector<4x384xf32>, vector<8x384xf32> -> vector<8x384xf32>
    %123 = arith.addf %118, %122 : vector<8x384xf32>
    %c3_119 = arith.constant 3 : index
    %c0_120 = arith.constant 0 : index
    %c0_121 = arith.constant 0 : index
    %124 = vector.load %arg4[%c3_119, %c0_120, %c0_121] : memref<9x8x4xf32, #tpu.memory_space<vmem>>, vector<1x8x4xf32>
    %125 = vector.shape_cast %124 : vector<1x8x4xf32> to vector<8x4xf32>
    %c0_122 = arith.constant 0 : index
    %c127_123 = arith.constant 127 : index
    %126 = vector.load %arg9[%c0_122, %c127_123] : memref<4x640xf32, #tpu.memory_space<vmem>>, vector<4x384xf32>
    %cst_124 = arith.constant dense<0.000000e+00> : vector<8x384xf32>
    %127 = tpu.matmul %125, %126, %cst_124 {dimension_numbers = #tpu.dot_dimension_numbers<[1], [0], [0], [1], [0, 0, 1, 1], [], []>} : vector<8x4xf32>, vector<4x384xf32>, vector<8x384xf32> -> vector<8x384xf32>
    %128 = arith.addf %123, %127 : vector<8x384xf32>
    %c4_125 = arith.constant 4 : index
    %c0_126 = arith.constant 0 : index
    %c0_127 = arith.constant 0 : index
    %129 = vector.load %arg4[%c4_125, %c0_126, %c0_127] : memref<9x8x4xf32, #tpu.memory_space<vmem>>, vector<1x8x4xf32>
    %130 = vector.shape_cast %129 : vector<1x8x4xf32> to vector<8x4xf32>
    %c0_128 = arith.constant 0 : index
    %c128_129 = arith.constant 128 : index
    %131 = vector.load %arg9[%c0_128, %c128_129] : memref<4x640xf32, #tpu.memory_space<vmem>>, vector<4x384xf32>
    %cst_130 = arith.constant dense<0.000000e+00> : vector<8x384xf32>
    %132 = tpu.matmul %130, %131, %cst_130 {dimension_numbers = #tpu.dot_dimension_numbers<[1], [0], [0], [1], [0, 0, 1, 1], [], []>} : vector<8x4xf32>, vector<4x384xf32>, vector<8x384xf32> -> vector<8x384xf32>
    %133 = arith.addf %128, %132 : vector<8x384xf32>
    %c5_131 = arith.constant 5 : index
    %c0_132 = arith.constant 0 : index
    %c0_133 = arith.constant 0 : index
    %134 = vector.load %arg4[%c5_131, %c0_132, %c0_133] : memref<9x8x4xf32, #tpu.memory_space<vmem>>, vector<1x8x4xf32>
    %135 = vector.shape_cast %134 : vector<1x8x4xf32> to vector<8x4xf32>
    %c0_134 = arith.constant 0 : index
    %c129 = arith.constant 129 : index
    %136 = vector.load %arg9[%c0_134, %c129] : memref<4x640xf32, #tpu.memory_space<vmem>>, vector<4x384xf32>
    %cst_135 = arith.constant dense<0.000000e+00> : vector<8x384xf32>
    %137 = tpu.matmul %135, %136, %cst_135 {dimension_numbers = #tpu.dot_dimension_numbers<[1], [0], [0], [1], [0, 0, 1, 1], [], []>} : vector<8x4xf32>, vector<4x384xf32>, vector<8x384xf32> -> vector<8x384xf32>
    %138 = arith.addf %133, %137 : vector<8x384xf32>
    %c6_136 = arith.constant 6 : index
    %c0_137 = arith.constant 0 : index
    %c0_138 = arith.constant 0 : index
    %139 = vector.load %arg4[%c6_136, %c0_137, %c0_138] : memref<9x8x4xf32, #tpu.memory_space<vmem>>, vector<1x8x4xf32>
    %140 = vector.shape_cast %139 : vector<1x8x4xf32> to vector<8x4xf32>
    %c0_139 = arith.constant 0 : index
    %c145_140 = arith.constant 145 : index
    %141 = vector.load %arg9[%c0_139, %c145_140] : memref<4x640xf32, #tpu.memory_space<vmem>>, vector<4x384xf32>
    %cst_141 = arith.constant dense<0.000000e+00> : vector<8x384xf32>
    %142 = tpu.matmul %140, %141, %cst_141 {dimension_numbers = #tpu.dot_dimension_numbers<[1], [0], [0], [1], [0, 0, 1, 1], [], []>} : vector<8x4xf32>, vector<4x384xf32>, vector<8x384xf32> -> vector<8x384xf32>
    %143 = arith.addf %138, %142 : vector<8x384xf32>
    %c7_142 = arith.constant 7 : index
    %c0_143 = arith.constant 0 : index
    %c0_144 = arith.constant 0 : index
    %144 = vector.load %arg4[%c7_142, %c0_143, %c0_144] : memref<9x8x4xf32, #tpu.memory_space<vmem>>, vector<1x8x4xf32>
    %145 = vector.shape_cast %144 : vector<1x8x4xf32> to vector<8x4xf32>
    %c0_145 = arith.constant 0 : index
    %c146 = arith.constant 146 : index
    %146 = vector.load %arg9[%c0_145, %c146] : memref<4x640xf32, #tpu.memory_space<vmem>>, vector<4x384xf32>
    %cst_146 = arith.constant dense<0.000000e+00> : vector<8x384xf32>
    %147 = tpu.matmul %145, %146, %cst_146 {dimension_numbers = #tpu.dot_dimension_numbers<[1], [0], [0], [1], [0, 0, 1, 1], [], []>} : vector<8x4xf32>, vector<4x384xf32>, vector<8x384xf32> -> vector<8x384xf32>
    %148 = arith.addf %143, %147 : vector<8x384xf32>
    %c8_147 = arith.constant 8 : index
    %c0_148 = arith.constant 0 : index
    %c0_149 = arith.constant 0 : index
    %149 = vector.load %arg4[%c8_147, %c0_148, %c0_149] : memref<9x8x4xf32, #tpu.memory_space<vmem>>, vector<1x8x4xf32>
    %150 = vector.shape_cast %149 : vector<1x8x4xf32> to vector<8x4xf32>
    %c0_150 = arith.constant 0 : index
    %c147 = arith.constant 147 : index
    %151 = vector.load %arg9[%c0_150, %c147] : memref<4x640xf32, #tpu.memory_space<vmem>>, vector<4x384xf32>
    %cst_151 = arith.constant dense<0.000000e+00> : vector<8x384xf32>
    %152 = tpu.matmul %150, %151, %cst_151 {dimension_numbers = #tpu.dot_dimension_numbers<[1], [0], [0], [1], [0, 0, 1, 1], [], []>} : vector<8x4xf32>, vector<4x384xf32>, vector<8x384xf32> -> vector<8x384xf32>
    %153 = arith.addf %148, %152 : vector<8x384xf32>
    %c0_152 = arith.constant 0 : index
    %c0_153 = arith.constant 0 : index
    %154 = vector.load %arg5[%c0_152, %c0_153] : memref<8x1xf32, #tpu.memory_space<vmem>>, vector<8x1xf32>
    %155 = vector.broadcast %154 : vector<8x1xf32> to vector<8x384xf32>
    %156 = arith.addf %153, %155 : vector<8x384xf32>
    %cst_154 = arith.constant 0.000000e+00 : f32
    %157 = vector.broadcast %cst_154 : f32 to vector<8x384xf32>
    %158 = arith.subf %157, %156 : vector<8x384xf32>
    %159 = math.exp %158 : vector<8x384xf32>
    %cst_155 = arith.constant 1.000000e+00 : f32
    %160 = vector.broadcast %cst_155 : f32 to vector<8x384xf32>
    %161 = arith.addf %160, %159 : vector<8x384xf32>
    %162 = tpu.reciprocal %161 {approx = true} : vector<8x384xf32> -> vector<8x384xf32>
    %163 = arith.mulf %156, %162 : vector<8x384xf32>
    %c0_156 = arith.constant 0 : index
    %c19_157 = arith.constant 19 : index
    %164 = vector.load %arg8[%c0_156, %c19_157] : memref<8x512xf32, #tpu.memory_space<vmem>>, vector<8x384xf32>
    %165 = arith.addf %163, %164 : vector<8x384xf32>
    %166 = vector.extract_strided_slice %165 {offsets = [0, 0], sizes = [8, 16], strides = [1, 1]} : vector<8x384xf32> to vector<8x16xf32>
    %c0_158 = arith.constant 0 : index
    %c0_159 = arith.constant 0 : index
    %c0_160 = arith.constant 0 : index
    %167 = vector.load %arg7[%c0_158, %c0_159, %c0_160] : memref<1x8x256xf32, #tpu.memory_space<vmem>>, vector<1x8x16xf32>
    %168 = vector.shape_cast %167 : vector<1x8x16xf32> to vector<8x16xf32>
    %169 = vector.shape_cast %166 : vector<8x16xf32> to vector<1x8x16xf32>
    tpu.vector_store %arg7[%c0_158, %c0_159, %c0_160], %169 {strides = array<i32>} : memref<1x8x256xf32, #tpu.memory_space<vmem>>, vector<1x8x16xf32>,
    %170 = vector.extract_strided_slice %165 {offsets = [0, 18], sizes = [8, 16], strides = [1, 1]} : vector<8x384xf32> to vector<8x16xf32>
    %c0_161 = arith.constant 0 : index
    %c0_162 = arith.constant 0 : index
    %c16_163 = arith.constant 16 : index
    %171 = vector.load %arg7[%c0_161, %c0_162, %c16_163] : memref<1x8x256xf32, #tpu.memory_space<vmem>>, vector<1x8x16xf32>
    %172 = vector.shape_cast %171 : vector<1x8x16xf32> to vector<8x16xf32>
    %173 = vector.shape_cast %170 : vector<8x16xf32> to vector<1x8x16xf32>
    tpu.vector_store %arg7[%c0_161, %c0_162, %c16_163], %173 {strides = array<i32>} : memref<1x8x256xf32, #tpu.memory_space<vmem>>, vector<1x8x16xf32>,
    %174 = vector.extract_strided_slice %165 {offsets = [0, 36], sizes = [8, 16], strides = [1, 1]} : vector<8x384xf32> to vector<8x16xf32>
    %c0_164 = arith.constant 0 : index
    %c0_165 = arith.constant 0 : index
    %c32_166 = arith.constant 32 : index
    %175 = vector.load %arg7[%c0_164, %c0_165, %c32_166] : memref<1x8x256xf32, #tpu.memory_space<vmem>>, vector<1x8x16xf32>
    %176 = vector.shape_cast %175 : vector<1x8x16xf32> to vector<8x16xf32>
    %177 = vector.shape_cast %174 : vector<8x16xf32> to vector<1x8x16xf32>
    tpu.vector_store %arg7[%c0_164, %c0_165, %c32_166], %177 {strides = array<i32>} : memref<1x8x256xf32, #tpu.memory_space<vmem>>, vector<1x8x16xf32>,
    %178 = vector.extract_strided_slice %165 {offsets = [0, 54], sizes = [8, 16], strides = [1, 1]} : vector<8x384xf32> to vector<8x16xf32>
    %c0_167 = arith.constant 0 : index
    %c0_168 = arith.constant 0 : index
    %c48_169 = arith.constant 48 : index
    %179 = vector.load %arg7[%c0_167, %c0_168, %c48_169] : memref<1x8x256xf32, #tpu.memory_space<vmem>>, vector<1x8x16xf32>
    %180 = vector.shape_cast %179 : vector<1x8x16xf32> to vector<8x16xf32>
    %181 = vector.shape_cast %178 : vector<8x16xf32> to vector<1x8x16xf32>
    tpu.vector_store %arg7[%c0_167, %c0_168, %c48_169], %181 {strides = array<i32>} : memref<1x8x256xf32, #tpu.memory_space<vmem>>, vector<1x8x16xf32>,
    %182 = vector.extract_strided_slice %165 {offsets = [0, 72], sizes = [8, 16], strides = [1, 1]} : vector<8x384xf32> to vector<8x16xf32>
    %c0_170 = arith.constant 0 : index
    %c0_171 = arith.constant 0 : index
    %c64_172 = arith.constant 64 : index
    %183 = vector.load %arg7[%c0_170, %c0_171, %c64_172] : memref<1x8x256xf32, #tpu.memory_space<vmem>>, vector<1x8x16xf32>
    %184 = vector.shape_cast %183 : vector<1x8x16xf32> to vector<8x16xf32>
    %185 = vector.shape_cast %182 : vector<8x16xf32> to vector<1x8x16xf32>
    tpu.vector_store %arg7[%c0_170, %c0_171, %c64_172], %185 {strides = array<i32>} : memref<1x8x256xf32, #tpu.memory_space<vmem>>, vector<1x8x16xf32>,
    %186 = vector.extract_strided_slice %165 {offsets = [0, 90], sizes = [8, 16], strides = [1, 1]} : vector<8x384xf32> to vector<8x16xf32>
    %c0_173 = arith.constant 0 : index
    %c0_174 = arith.constant 0 : index
    %c80_175 = arith.constant 80 : index
    %187 = vector.load %arg7[%c0_173, %c0_174, %c80_175] : memref<1x8x256xf32, #tpu.memory_space<vmem>>, vector<1x8x16xf32>
    %188 = vector.shape_cast %187 : vector<1x8x16xf32> to vector<8x16xf32>
    %189 = vector.shape_cast %186 : vector<8x16xf32> to vector<1x8x16xf32>
    tpu.vector_store %arg7[%c0_173, %c0_174, %c80_175], %189 {strides = array<i32>} : memref<1x8x256xf32, #tpu.memory_space<vmem>>, vector<1x8x16xf32>,
    %190 = vector.extract_strided_slice %165 {offsets = [0, 108], sizes = [8, 16], strides = [1, 1]} : vector<8x384xf32> to vector<8x16xf32>
    %c0_176 = arith.constant 0 : index
    %c0_177 = arith.constant 0 : index
    %c96_178 = arith.constant 96 : index
    %191 = vector.load %arg7[%c0_176, %c0_177, %c96_178] : memref<1x8x256xf32, #tpu.memory_space<vmem>>, vector<1x8x16xf32>
    %192 = vector.shape_cast %191 : vector<1x8x16xf32> to vector<8x16xf32>
    %193 = vector.shape_cast %190 : vector<8x16xf32> to vector<1x8x16xf32>
    tpu.vector_store %arg7[%c0_176, %c0_177, %c96_178], %193 {strides = array<i32>} : memref<1x8x256xf32, #tpu.memory_space<vmem>>, vector<1x8x16xf32>,
    %194 = vector.extract_strided_slice %165 {offsets = [0, 126], sizes = [8, 16], strides = [1, 1]} : vector<8x384xf32> to vector<8x16xf32>
    %c0_179 = arith.constant 0 : index
    %c0_180 = arith.constant 0 : index
    %c112_181 = arith.constant 112 : index
    %195 = vector.load %arg7[%c0_179, %c0_180, %c112_181] : memref<1x8x256xf32, #tpu.memory_space<vmem>>, vector<1x8x16xf32>
    %196 = vector.shape_cast %195 : vector<1x8x16xf32> to vector<8x16xf32>
    %197 = vector.shape_cast %194 : vector<8x16xf32> to vector<1x8x16xf32>
    tpu.vector_store %arg7[%c0_179, %c0_180, %c112_181], %197 {strides = array<i32>} : memref<1x8x256xf32, #tpu.memory_space<vmem>>, vector<1x8x16xf32>,
    %198 = vector.extract_strided_slice %165 {offsets = [0, 144], sizes = [8, 16], strides = [1, 1]} : vector<8x384xf32> to vector<8x16xf32>
    %c0_182 = arith.constant 0 : index
    %c0_183 = arith.constant 0 : index
    %c128_184 = arith.constant 128 : index
    %199 = vector.load %arg7[%c0_182, %c0_183, %c128_184] : memref<1x8x256xf32, #tpu.memory_space<vmem>>, vector<1x8x16xf32>
    %200 = vector.shape_cast %199 : vector<1x8x16xf32> to vector<8x16xf32>
    %201 = vector.shape_cast %198 : vector<8x16xf32> to vector<1x8x16xf32>
    tpu.vector_store %arg7[%c0_182, %c0_183, %c128_184], %201 {strides = array<i32>} : memref<1x8x256xf32, #tpu.memory_space<vmem>>, vector<1x8x16xf32>,
    %202 = vector.extract_strided_slice %165 {offsets = [0, 162], sizes = [8, 16], strides = [1, 1]} : vector<8x384xf32> to vector<8x16xf32>
    %c0_185 = arith.constant 0 : index
    %c0_186 = arith.constant 0 : index
    %c144_187 = arith.constant 144 : index
    %203 = vector.load %arg7[%c0_185, %c0_186, %c144_187] : memref<1x8x256xf32, #tpu.memory_space<vmem>>, vector<1x8x16xf32>
    %204 = vector.shape_cast %203 : vector<1x8x16xf32> to vector<8x16xf32>
    %205 = vector.shape_cast %202 : vector<8x16xf32> to vector<1x8x16xf32>
    tpu.vector_store %arg7[%c0_185, %c0_186, %c144_187], %205 {strides = array<i32>} : memref<1x8x256xf32, #tpu.memory_space<vmem>>, vector<1x8x16xf32>,
    %206 = vector.extract_strided_slice %165 {offsets = [0, 180], sizes = [8, 16], strides = [1, 1]} : vector<8x384xf32> to vector<8x16xf32>
    %c0_188 = arith.constant 0 : index
    %c0_189 = arith.constant 0 : index
    %c160_190 = arith.constant 160 : index
    %207 = vector.load %arg7[%c0_188, %c0_189, %c160_190] : memref<1x8x256xf32, #tpu.memory_space<vmem>>, vector<1x8x16xf32>
    %208 = vector.shape_cast %207 : vector<1x8x16xf32> to vector<8x16xf32>
    %209 = vector.shape_cast %206 : vector<8x16xf32> to vector<1x8x16xf32>
    tpu.vector_store %arg7[%c0_188, %c0_189, %c160_190], %209 {strides = array<i32>} : memref<1x8x256xf32, #tpu.memory_space<vmem>>, vector<1x8x16xf32>,
    %210 = vector.extract_strided_slice %165 {offsets = [0, 198], sizes = [8, 16], strides = [1, 1]} : vector<8x384xf32> to vector<8x16xf32>
    %c0_191 = arith.constant 0 : index
    %c0_192 = arith.constant 0 : index
    %c176_193 = arith.constant 176 : index
    %211 = vector.load %arg7[%c0_191, %c0_192, %c176_193] : memref<1x8x256xf32, #tpu.memory_space<vmem>>, vector<1x8x16xf32>
    %212 = vector.shape_cast %211 : vector<1x8x16xf32> to vector<8x16xf32>
    %213 = vector.shape_cast %210 : vector<8x16xf32> to vector<1x8x16xf32>
    tpu.vector_store %arg7[%c0_191, %c0_192, %c176_193], %213 {strides = array<i32>} : memref<1x8x256xf32, #tpu.memory_space<vmem>>, vector<1x8x16xf32>,
    %214 = vector.extract_strided_slice %165 {offsets = [0, 216], sizes = [8, 16], strides = [1, 1]} : vector<8x384xf32> to vector<8x16xf32>
    %c0_194 = arith.constant 0 : index
    %c0_195 = arith.constant 0 : index
    %c192_196 = arith.constant 192 : index
    %215 = vector.load %arg7[%c0_194, %c0_195, %c192_196] : memref<1x8x256xf32, #tpu.memory_space<vmem>>, vector<1x8x16xf32>
    %216 = vector.shape_cast %215 : vector<1x8x16xf32> to vector<8x16xf32>
    %217 = vector.shape_cast %214 : vector<8x16xf32> to vector<1x8x16xf32>
    tpu.vector_store %arg7[%c0_194, %c0_195, %c192_196], %217 {strides = array<i32>} : memref<1x8x256xf32, #tpu.memory_space<vmem>>, vector<1x8x16xf32>,
    %218 = vector.extract_strided_slice %165 {offsets = [0, 234], sizes = [8, 16], strides = [1, 1]} : vector<8x384xf32> to vector<8x16xf32>
    %c0_197 = arith.constant 0 : index
    %c0_198 = arith.constant 0 : index
    %c208_199 = arith.constant 208 : index
    %219 = vector.load %arg7[%c0_197, %c0_198, %c208_199] : memref<1x8x256xf32, #tpu.memory_space<vmem>>, vector<1x8x16xf32>
    %220 = vector.shape_cast %219 : vector<1x8x16xf32> to vector<8x16xf32>
    %221 = vector.shape_cast %218 : vector<8x16xf32> to vector<1x8x16xf32>
    tpu.vector_store %arg7[%c0_197, %c0_198, %c208_199], %221 {strides = array<i32>} : memref<1x8x256xf32, #tpu.memory_space<vmem>>, vector<1x8x16xf32>,
    %222 = vector.extract_strided_slice %165 {offsets = [0, 252], sizes = [8, 16], strides = [1, 1]} : vector<8x384xf32> to vector<8x16xf32>
    %c0_200 = arith.constant 0 : index
    %c0_201 = arith.constant 0 : index
    %c224_202 = arith.constant 224 : index
    %223 = vector.load %arg7[%c0_200, %c0_201, %c224_202] : memref<1x8x256xf32, #tpu.memory_space<vmem>>, vector<1x8x16xf32>
    %224 = vector.shape_cast %223 : vector<1x8x16xf32> to vector<8x16xf32>
    %225 = vector.shape_cast %222 : vector<8x16xf32> to vector<1x8x16xf32>
    tpu.vector_store %arg7[%c0_200, %c0_201, %c224_202], %225 {strides = array<i32>} : memref<1x8x256xf32, #tpu.memory_space<vmem>>, vector<1x8x16xf32>,
    %226 = vector.extract_strided_slice %165 {offsets = [0, 270], sizes = [8, 16], strides = [1, 1]} : vector<8x384xf32> to vector<8x16xf32>
    %c0_203 = arith.constant 0 : index
    %c0_204 = arith.constant 0 : index
    %c240_205 = arith.constant 240 : index
    %227 = vector.load %arg7[%c0_203, %c0_204, %c240_205] : memref<1x8x256xf32, #tpu.memory_space<vmem>>, vector<1x8x16xf32>
    %228 = vector.shape_cast %227 : vector<1x8x16xf32> to vector<8x16xf32>
    %229 = vector.shape_cast %226 : vector<8x16xf32> to vector<1x8x16xf32>
    tpu.vector_store %arg7[%c0_203, %c0_204, %c240_205], %229 {strides = array<i32>} : memref<1x8x256xf32, #tpu.memory_space<vmem>>, vector<1x8x16xf32>,
    return
  }
  func.func @transform_0(%arg0: i32) -> (i32, i32, i32) {
    %c0_i32 = arith.constant 0 : i32
    %c0_i32_0 = arith.constant 0 : i32
    %c0_i32_1 = arith.constant 0 : i32
    return %arg0, %c0_i32, %c0_i32_0 : i32, i32, i32
  }
  func.func @transform_1(%arg0: i32) -> (i32, i32, i32) {
    %c0_i32 = arith.constant 0 : i32
    %c0_i32_0 = arith.constant 0 : i32
    %c0_i32_1 = arith.constant 0 : i32
    %c0_i32_2 = arith.constant 0 : i32
    return %c0_i32, %c0_i32_0, %c0_i32_1 : i32, i32, i32
  }
  func.func @transform_2(%arg0: i32) -> (i32, i32) {
    %c0_i32 = arith.constant 0 : i32
    %c0_i32_0 = arith.constant 0 : i32
    %c0_i32_1 = arith.constant 0 : i32
    return %c0_i32, %c0_i32_0 : i32, i32
  }
  func.func @transform_3(%arg0: i32) -> (i32, i32, i32) {
    %c0_i32 = arith.constant 0 : i32
    %c0_i32_0 = arith.constant 0 : i32
    %c0_i32_1 = arith.constant 0 : i32
    %c0_i32_2 = arith.constant 0 : i32
    return %c0_i32, %c0_i32_0, %c0_i32_1 : i32, i32, i32
  }
  func.func @transform_4(%arg0: i32) -> (i32, i32) {
    %c0_i32 = arith.constant 0 : i32
    %c0_i32_0 = arith.constant 0 : i32
    %c0_i32_1 = arith.constant 0 : i32
    return %c0_i32, %c0_i32_0 : i32, i32
  }
  func.func @transform_5(%arg0: i32) -> (i32, i32) {
    %c0_i32 = arith.constant 0 : i32
    %c0_i32_0 = arith.constant 0 : i32
    %c0_i32_1 = arith.constant 0 : i32
    return %c0_i32, %c0_i32_0 : i32, i32
  }
  func.func @transform_6(%arg0: i32) -> (i32, i32, i32) {
    %c0_i32 = arith.constant 0 : i32
    %c0_i32_0 = arith.constant 0 : i32
    %c0_i32_1 = arith.constant 0 : i32
    return %arg0, %c0_i32, %c0_i32_0 : i32, i32, i32
  }
}

</mosaic_0001>

<llo_original>
// kernel: _lambda_.1
$region0: #{_lambda_.1}
  #allocation0 [shape = 'u32[]', space=smem, size = 0x4, offset = 0x4, fixed_abs, tag = 'smem constant byte address 0x4 - core index']
  #allocation1 [shape = 'u32[72,128]{1,0:T(1,128)}', space=vmem, size = 0x9000, scoped, tag = 'internal scratch']
  #allocation2 [shape = 'f32[8,512]{1,0:T(8,128)}', space=vmem, size = 0x4000, scoped, tag = 'scratch operand']
  #allocation3 [shape = 'f32[4,640]{1,0:T(4,128)}', space=vmem, size = 0x2800, scoped, tag = 'scratch operand']
  %s0 = inlined_call_operand.vmem [shape: f32[2,8,256], index: 0, kind: input, shape index: {}]
  %s1 = inlined_call_operand.vmem [shape: f32[9,4,8], index: 1, kind: input, shape index: {}]
  %s2 = inlined_call_operand.vmem [shape: f32[4,1], index: 2, kind: input, shape index: {}]
  %s3 = inlined_call_operand.vmem [shape: f32[9,8,4], index: 3, kind: input, shape index: {}]
  %s4 = inlined_call_operand.vmem [shape: f32[8,1], index: 4, kind: input, shape index: {}]
  %s5 = inlined_call_operand.vmem [shape: f32[1,384], index: 5, kind: input, shape index: {}]
  %s6 = inlined_call_operand.vmem [shape: f32[2,8,256], index: 6, kind: output, shape index: {}]
  %s7 = sld [smem:[#allocation0]]
  $region57: #{_lambda_.1} parent=0
    _
  %s9 = ssub.s32 1, %s7
  %s10 = scalar_select 0, %s9, %s7
  loop: start=0, step=1, limit=4
  $region2: #{_lambda_.1} parent=0 // loop_pre_header
    _
  $region3: #{_lambda_.1} parent=0 // loop_header
    %s12 = sphi 0, %s16
    %p13 = scmp.ge.s32.totalorder %s12, 4
    %s22 = sphi 0, %s24
    %s25 = sphi 0, %s22
    %s26 = sphi 0, %s25
    %s42 = sphi 0, %s26
    %s46 = sphi 0, %s46
    %s48 = sphi 0, %s46
    %s49 = sphi 0, %s48
    %s63 = sphi 0, %s49
    %s67 = sphi 0, %s67
    %s69 = sphi 0, %s67
    %s70 = sphi 0, %s69
    %s84 = sphi 0, %s70
    %s88 = sphi 0, %s88
    %s90 = sphi 0, %s88
    %s91 = sphi 0, %s90
    %s105 = sphi 0, %s91
    %s109 = sphi 0, %s109
    %s111 = sphi 0, %s109
    %s112 = sphi 0, %s111
    %s126 = sphi 0, %s112
    %s130 = sphi 0, %s130
    %s132 = sphi 0, %s130
    %s133 = sphi 0, %s132
    %s147 = sphi 0, %s133
    %s153 = sphi 0, %s155
    %s156 = sphi 0, %s153
    %s157 = sphi 0, %s156
    %s173 = sphi 0, %s157
  $region4: #{_lambda_.1} parent=0 // loop_header_branch
    %15 = sbr.rel (%p13) target = $region8
  $region5: #{_lambda_.1} parent=0 // loop_body
    %s17 = ssub.s32 %s12, 1
    %s18 = ssub.s32 %s12, 2
    %s19 = sadd.s32 %s12, 1
    %s20 = ssub.s32 %s12, %s19
    %p21 = scmp.eq.s32.totalorder %s20, 0
    %s23 = sadd.s32 %s22, 1
    %s24 = scalar_select %p21, %s22, %s23
    %p27 = pneg %p21
    %p28 = scmp.eq.s32.totalorder %s12, 1
    %p29 = por %p27, %p28
    %p30 = scmp.ne.s32.totalorder %s22, %s25
    %p31 = scmp.eq.s32.totalorder %s12, 0
    %p32 = por %p30, %p31
    %p33 = scmp.ne.s32.totalorder %s22, %s25
    %p34 = scmp.eq.s32.totalorder %s17, 1
    %p35 = por %p33, %p34
    %p36 = scmp.ne.s32.totalorder %s25, %s26
    %p37 = scmp.eq.s32.totalorder %s17, 0
    %p38 = por %p36, %p37
    %p39 = scmp.ne.s32.totalorder %s25, %s26
    %p40 = scmp.eq.s32.totalorder %s18, 1
    %p41 = por %p39, %p40
    %p43 = scmp.ne.s32.totalorder %s26, %s42
    %p44 = scmp.eq.s32.totalorder %s18, 0
    %p45 = por %p43, %p44
    %s47 = sadd.s32 %s46, 1
    %p50 = scmp.eq.s32.totalorder %s12, 1
    %p51 = scmp.ne.s32.totalorder %s46, %s48
    %p52 = scmp.eq.s32.totalorder %s12, 0
    %p53 = por %p51, %p52
    %p54 = scmp.ne.s32.totalorder %s46, %s48
    %p55 = scmp.eq.s32.totalorder %s17, 1
    %p56 = por %p54, %p55
    %p57 = scmp.ne.s32.totalorder %s48, %s49
    %p58 = scmp.eq.s32.totalorder %s17, 0
    %p59 = por %p57, %p58
    %p60 = scmp.ne.s32.totalorder %s48, %s49
    %p61 = scmp.eq.s32.totalorder %s18, 1
    %p62 = por %p60, %p61
    %p64 = scmp.ne.s32.totalorder %s49, %s63
    %p65 = scmp.eq.s32.totalorder %s18, 0
    %p66 = por %p64, %p65
    %s68 = sadd.s32 %s67, 1
    %p71 = scmp.eq.s32.totalorder %s12, 1
    %p72 = scmp.ne.s32.totalorder %s67, %s69
    %p73 = scmp.eq.s32.totalorder %s12, 0
    %p74 = por %p72, %p73
    %p75 = scmp.ne.s32.totalorder %s67, %s69
    %p76 = scmp.eq.s32.totalorder %s17, 1
    %p77 = por %p75, %p76
    %p78 = scmp.ne.s32.totalorder %s69, %s70
    %p79 = scmp.eq.s32.totalorder %s17, 0
    %p80 = por %p78, %p79
    %p81 = scmp.ne.s32.totalorder %s69, %s70
    %p82 = scmp.eq.s32.totalorder %s18, 1
    %p83 = por %p81, %p82
    %p85 = scmp.ne.s32.totalorder %s70, %s84
    %p86 = scmp.eq.s32.totalorder %s18, 0
    %p87 = por %p85, %p86
    %s89 = sadd.s32 %s88, 1
    %p92 = scmp.eq.s32.totalorder %s12, 1
    %p93 = scmp.ne.s32.totalorder %s88, %s90
    %p94 = scmp.eq.s32.totalorder %s12, 0
    %p95 = por %p93, %p94
    %p96 = scmp.ne.s32.totalorder %s88, %s90
    %p97 = scmp.eq.s32.totalorder %s17, 1
    %p98 = por %p96, %p97
    %p99 = scmp.ne.s32.totalorder %s90, %s91
    %p100 = scmp.eq.s32.totalorder %s17, 0
    %p101 = por %p99, %p100
    %p102 = scmp.ne.s32.totalorder %s90, %s91
    %p103 = scmp.eq.s32.totalorder %s18, 1
    %p104 = por %p102, %p103
    %p106 = scmp.ne.s32.totalorder %s91, %s105
    %p107 = scmp.eq.s32.totalorder %s18, 0
    %p108 = por %p106, %p107
    %s110 = sadd.s32 %s109, 1
    %p113 = scmp.eq.s32.totalorder %s12, 1
    %p114 = scmp.ne.s32.totalorder %s109, %s111
    %p115 = scmp.eq.s32.totalorder %s12, 0
    %p116 = por %p114, %p115
    %p117 = scmp.ne.s32.totalorder %s109, %s111
    %p118 = scmp.eq.s32.totalorder %s17, 1
    %p119 = por %p117, %p118
    %p120 = scmp.ne.s32.totalorder %s111, %s112
    %p121 = scmp.eq.s32.totalorder %s17, 0
    %p122 = por %p120, %p121
    %p123 = scmp.ne.s32.totalorder %s111, %s112
    %p124 = scmp.eq.s32.totalorder %s18, 1
    %p125 = por %p123, %p124
    %p127 = scmp.ne.s32.totalorder %s112, %s126
    %p128 = scmp.eq.s32.totalorder %s18, 0
    %p129 = por %p127, %p128
    %s131 = sadd.s32 %s130, 1
    %p134 = scmp.eq.s32.totalorder %s12, 1
    %p135 = scmp.ne.s32.totalorder %s130, %s132
    %p136 = scmp.eq.s32.totalorder %s12, 0
    %p137 = por %p135, %p136
    %p138 = scmp.ne.s32.totalorder %s130, %s132
    %p139 = scmp.eq.s32.totalorder %s17, 1
    %p140 = por %p138, %p139
    %p141 = scmp.ne.s32.totalorder %s132, %s133
    %p142 = scmp.eq.s32.totalorder %s17, 0
    %p143 = por %p141, %p142
    %p144 = scmp.ne.s32.totalorder %s132, %s133
    %p145 = scmp.eq.s32.totalorder %s18, 1
    %p146 = por %p144, %p145
    %p148 = scmp.ne.s32.totalorder %s133, %s147
    %p149 = scmp.eq.s32.totalorder %s18, 0
    %p150 = por %p148, %p149
    %s151 = ssub.s32 %s12, %s19
    %p152 = scmp.eq.s32.totalorder %s151, 0
    %s154 = sadd.s32 %s153, 1
    %s155 = scalar_select %p152, %s153, %s154
    %p158 = pneg %p152
    %p159 = scmp.eq.s32.totalorder %s12, 1
    %p160 = por %p158, %p159
    %p161 = scmp.ne.s32.totalorder %s153, %s156
    %p162 = scmp.eq.s32.totalorder %s12, 0
    %p163 = por %p161, %p162
    %p164 = scmp.ne.s32.totalorder %s153, %s156
    %p165 = scmp.eq.s32.totalorder %s17, 1
    %p166 = por %p164, %p165
    %p167 = scmp.ne.s32.totalorder %s156, %s157
    %p168 = scmp.eq.s32.totalorder %s17, 0
    %p169 = por %p167, %p168
    %p170 = scmp.ne.s32.totalorder %s156, %s157
    %p171 = scmp.eq.s32.totalorder %s18, 1
    %p172 = por %p170, %p171
    %p174 = scmp.ne.s32.totalorder %s157, %s173
    %p175 = scmp.eq.s32.totalorder %s18, 0
    %p176 = por %p174, %p175
    %p177 = scmp.le.s32.totalorder 1, %s12
    %p178 = scmp.lt.s32.totalorder %s12, 3
    %p179 = pnand %p177, %p178
    %p180 = pneg %p179
    // Predicated region
    $region9: #{_lambda_.1} parent=5 // pred_check
      _
    $region10: #{_lambda_.1} parent=5 // pred_check_branch
      %182 = sbr.rel (%p179) target = $region12
    $region11: #{_lambda_.1} parent=5 // pred_region
      %s183 = ssub.s32 %s12, 1
      // Predicated region
      $region13: #{_lambda_.1} parent=11 // pred_check
        %p184 = pneg %p59
      $region14: #{_lambda_.1} parent=11 // pred_check_branch
        %186 = sbr.rel (%p184) target = $region16
      $region15: #{_lambda_.1} parent=11 // pred_region
        _
      $region16: #{_lambda_.1} parent=11 // pred_fallthru
        _
      // Predicated region
      $region17: #{_lambda_.1} parent=11 // pred_check
        %p187 = pneg %p80
      $region18: #{_lambda_.1} parent=11 // pred_check_branch
        %189 = sbr.rel (%p187) target = $region20
      $region19: #{_lambda_.1} parent=11 // pred_region
        _
      $region20: #{_lambda_.1} parent=11 // pred_fallthru
        _
      // Predicated region
      $region21: #{_lambda_.1} parent=11 // pred_check
        %p190 = pneg %p101
      $region22: #{_lambda_.1} parent=11 // pred_check_branch
        %192 = sbr.rel (%p190) target = $region24
      $region23: #{_lambda_.1} parent=11 // pred_region
        _
      $region24: #{_lambda_.1} parent=11 // pred_fallthru
        _
      // Predicated region
      $region25: #{_lambda_.1} parent=11 // pred_check
        %p193 = pneg %p122
      $region26: #{_lambda_.1} parent=11 // pred_check_branch
        %195 = sbr.rel (%p193) target = $region28
      $region27: #{_lambda_.1} parent=11 // pred_region
        _
      $region28: #{_lambda_.1} parent=11 // pred_fallthru
        _
      // Predicated region
      $region29: #{_lambda_.1} parent=11 // pred_check
        %p196 = pneg %p143
      $region30: #{_lambda_.1} parent=11 // pred_check_branch
        %198 = sbr.rel (%p196) target = $region32
      $region31: #{_lambda_.1} parent=11 // pred_region
        _
      $region32: #{_lambda_.1} parent=11 // pred_fallthru
        _
    $region12: #{_lambda_.1} parent=5 // pred_fallthru
      _
    %p199 = scmp.lt.s32.totalorder %s12, 2
    // Predicated region
    $region33: #{_lambda_.1} parent=5 // pred_check
      %p200 = pneg %p199
    $region34: #{_lambda_.1} parent=5 // pred_check_branch
      %202 = sbr.rel (%p200) target = $region36
    $region35: #{_lambda_.1} parent=5 // pred_region
      // Predicated region
      $region37: #{_lambda_.1} parent=35 // pred_check
        %p203 = pneg %p32
      $region38: #{_lambda_.1} parent=35 // pred_check_branch
        %205 = sbr.rel (%p203) target = $region40
      $region39: #{_lambda_.1} parent=35 // pred_region
        %p206 = scmp.lt.s32.totalorder %s12, 1
        %s207 = scalar_select %p206, %s12, 1
        %s208 = smul.addr %s207, 2
        %s209 = smul.addr %s208, 8
        %s210 = scalar_lea.vmem %s0, %s209
      $region40: #{_lambda_.1} parent=35 // pred_fallthru
        _
    $region36: #{_lambda_.1} parent=5 // pred_fallthru
      _
    %p211 = scmp.le.s32.totalorder 1, %s12
    %p212 = scmp.lt.s32.totalorder %s12, 3
    %p213 = pnand %p211, %p212
    %p214 = pneg %p213
    // Predicated region
    $region41: #{_lambda_.1} parent=5 // pred_check
      _
    $region42: #{_lambda_.1} parent=5 // pred_check_branch
      %216 = sbr.rel (%p213) target = $region44
    $region43: #{_lambda_.1} parent=5 // pred_region
      %s217 = ssub.s32 %s12, 1
      %p218 = scmp.lt.s32.totalorder %s17, 1
      %s219 = scalar_select %p218, %s17, 1
      %s220 = smul.addr %s219, 2
      %s221 = smul.addr %s220, 8
      %s222 = scalar_lea.vmem %s0, %s221
      %p223 = pneg %p38
      %p224 = pneg %p35
      %p225 = pneg %p59
      %p226 = pneg %p56
      %p227 = pneg %p80
      %p228 = pneg %p77
      %p229 = pneg %p101
      %p230 = pneg %p98
      %p231 = pneg %p122
      %p232 = pneg %p119
      %p233 = pneg %p143
      %p234 = pneg %p140
      %p235 = pneg %p169
      %p236 = pneg %p166
      %p237 = scmp.lt.s32.totalorder %s17, 1
      %s238 = scalar_select %p237, %s17, 1
      %s239 = smul.addr %s238, 2
      %s240 = smul.addr %s239, 8
      %s241 = scalar_lea.vmem %s6, %s240
      %p242 = scmp.lt.s32.totalorder %s17, 1
      %s243 = scalar_select %p242, %s17, 1
      %s244 = smul.addr %s243, 2
      %s245 = smul.addr %s244, 8
      %s246 = scalar_lea.vmem %s0, %s245
      %p247 = scmp.lt.s32.totalorder %s17, 1
      %s248 = scalar_select %p247, %s17, 1
      %s249 = smul.addr %s248, 2
      %s250 = smul.addr %s249, 8
      %s251 = scalar_lea.vmem %s6, %s250
      %252 = vst [vmem:[#allocation2] sm:$0xff] 0.0
      %253 = vst [vmem:[#allocation2 + $0x8] sm:$0xff] 0.0
      %254 = vst [vmem:[#allocation2 + $0x10] sm:$0xff] 0.0
      %255 = vst [vmem:[#allocation2 + $0x18] sm:$0xff] 0.0
      %v256 = vld [vmem:[%s246] sm:$0xff]
      %258 = vrot.lane.b32.xlu0 %v256, 19
      %v259 = vpop.permute.xlu0 %258
      %vm261 = vcmask 285848
      %262 = vst.msk [vmem:[#allocation2] sm:$0xff] %vm261, %v259
      %v263 = vld [vmem:[%s246] sm:$0xff]
      %265 = vrot.lane.b32.xlu0 %v263, 21
      %v266 = vpop.permute.xlu0 %265
      %vm268 = vcmask 433448
      %269 = vst.msk [vmem:[#allocation2] sm:$0xff] %vm268, %v266
      %v270 = vld [vmem:[%s246] sm:$0xff]
      %272 = vrot.lane.b32.xlu0 %v270, 23
      %v273 = vpop.permute.xlu0 %272
      %vm275 = vcmask 581048
      %276 = vst.msk [vmem:[#allocation2] sm:$0xff] %vm275, %v273
      %v277 = vld [vmem:[%s246] sm:$0xff]
      %279 = vrot.lane.b32.xlu0 %v277, 25
      %v280 = vpop.permute.xlu0 %279
      %vm282 = vcmask 728648
      %283 = vst.msk [vmem:[#allocation2] sm:$0xff] %vm282, %v280
      %v284 = vld [vmem:[%s246] sm:$0xff]
      %286 = vrot.lane.b32.xlu0 %v284, 27
      %v287 = vpop.permute.xlu0 %286
      %vm289 = vcmask 876248
      %290 = vst.msk [vmem:[#allocation2] sm:$0xff] %vm289, %v287
      %v291 = vld [vmem:[%s246] sm:$0xff]
      %293 = vrot.lane.b32.xlu0 %v291, 29
      %v294 = vpop.permute.xlu0 %293
      %vm296 = vcmask 1023848
      %297 = vst.msk [vmem:[#allocation2] sm:$0xff] %vm296, %v294
      %v298 = vld [vmem:[%s246] sm:$0xff]
      %300 = vrot.lane.b32.xlu0 %v298, 31
      %v301 = vpop.permute.xlu0 %300
      %vm303 = vcmask 1048568
      %304 = vst.msk [vmem:[#allocation2] sm:$0xff] %vm303, %v301
      %vm305 = vcmask 121856
      %306 = vst.msk [vmem:[#allocation2 + $0x8] sm:$0xff] %vm305, %v301
      %v307 = vld [vmem:[%s246] sm:$0xff]
      %309 = vrot.lane.b32.xlu0 %v307, 33
      %v310 = vpop.permute.xlu0 %309
      %vm312 = vcmask 269448
      %313 = vst.msk [vmem:[#allocation2 + $0x8] sm:$0xff] %vm312, %v310
      %v314 = vld [vmem:[%s246 + $0x8] sm:$0xff]
      %316 = vrot.lane.b32.xlu0 %v314, 35
      %v317 = vpop.permute.xlu0 %316
      %vm319 = vcmask 417048
      %320 = vst.msk [vmem:[#allocation2 + $0x8] sm:$0xff] %vm319, %v317
      %v321 = vld [vmem:[%s246 + $0x8] sm:$0xff]
      %323 = vrot.lane.b32.xlu0 %v321, 37
      %v324 = vpop.permute.xlu0 %323
      %vm326 = vcmask 564648
      %327 = vst.msk [vmem:[#allocation2 + $0x8] sm:$0xff] %vm326, %v324
      %v328 = vld [vmem:[%s246 + $0x8] sm:$0xff]
      %330 = vrot.lane.b32.xlu0 %v328, 39
      %v331 = vpop.permute.xlu0 %330
      %vm333 = vcmask 712248
      %334 = vst.msk [vmem:[#allocation2 + $0x8] sm:$0xff] %vm333, %v331
      %v335 = vld [vmem:[%s246 + $0x8] sm:$0xff]
      %337 = vrot.lane.b32.xlu0 %v335, 41
      %v338 = vpop.permute.xlu0 %337
      %vm340 = vcmask 859848
      %341 = vst.msk [vmem:[#allocation2 + $0x8] sm:$0xff] %vm340, %v338
      %v342 = vld [vmem:[%s246 + $0x8] sm:$0xff]
      %344 = vrot.lane.b32.xlu0 %v342, 43
      %v345 = vpop.permute.xlu0 %344
      %vm347 = vcmask 1007448
      %348 = vst.msk [vmem:[#allocation2 + $0x8] sm:$0xff] %vm347, %v345
      %v349 = vld [vmem:[%s246 + $0x8] sm:$0xff]
      %351 = vrot.lane.b32.xlu0 %v349, 45
      %v352 = vpop.permute.xlu0 %351
      %vm354 = vcmask 1048552
      %355 = vst.msk [vmem:[#allocation2 + $0x8] sm:$0xff] %vm354, %v352
      %vm356 = vcmask 105472
      %357 = vst.msk [vmem:[#allocation2 + $0x10] sm:$0xff] %vm356, %v352
      %v358 = vld [vmem:[%s246 + $0x8] sm:$0xff]
      %360 = vrot.lane.b32.xlu0 %v358, 47
      %v361 = vpop.permute.xlu0 %360
      %vm363 = vcmask 253048
      %364 = vst.msk [vmem:[#allocation2 + $0x10] sm:$0xff] %vm363, %v361
      %v365 = vld [vmem:[%s246 + $0x8] sm:$0xff]
      %367 = vrot.lane.b32.xlu0 %v365, 49
      %v368 = vpop.permute.xlu0 %367
      %vm370 = vcmask 400648
      %371 = vst.msk [vmem:[#allocation2 + $0x10] sm:$0xff] %vm370, %v368
      %v372 = vld [vmem:[%s1] sm:$0xf]
      %v373 = vld [vmem:[#allocation2] sm:$0xff]
      %v374 = vld [vmem:[#allocation2 + $0x8] sm:$0xff]
      %v375 = vld [vmem:[#allocation2 + $0x10] sm:$0xff]
      %s376 = scalar_lea.vmem %s1, 4
      %v377 = vld [vmem:[%s376] sm:$0xf]
      %v378 = vld [vmem:[#allocation2] sm:$0xff]
      %v379 = vld [vmem:[#allocation2 + $0x8] sm:$0xff]
      %v380 = vld [vmem:[#allocation2 + $0x10] sm:$0xff]
      %v381 = vld [vmem:[#allocation2 + $0x18] sm:$0xff]
      %386 = vrot.lane.b32.xlu0 %v378, 127
      %v387 = vpop.permute.xlu0 %386
      %388 = vrot.lane.b32.xlu0 %v379, 127
      %v389 = vpop.permute.xlu0 %388
      %390 = vrot.lane.b32.xlu0 %v380, 127
      %v391 = vpop.permute.xlu0 %390
      %392 = vrot.lane.b32.xlu0 %v381, 127
      %v393 = vpop.permute.xlu0 %392
      %vm394 = vcmask 1039360
      %v395 = vsel %vm394, %v387, %v389
      %v396 = vsel %vm394, %v389, %v391
      %v397 = vsel %vm394, %v391, %v393
      %vm401 = vcmask 64512
      %v403 = vsel %vm401, %v377, 0
      %405 = vmatpush.msra.mxu0 0.0
      %406 = vmatpush.msra.mxu0 0.0
      %407 = vmatpush.msra.mxu0 0.0
      %408 = vmatpush.msra.mxu0 0.0
      %409 = vmatpush.msra.mxu0 0.0
      %410 = vmatpush.msra.mxu0 0.0
      %411 = vmatpush.msra.mxu0 0.0
      %412 = vmatpush.msra.mxu0 0.0
      %413 = vmatpush.msra.mxu0 0.0
      %414 = vmatpush.msra.mxu0 0.0
      %415 = vmatpush.msra.mxu0 0.0
      %416 = vmatpush.msra.mxu0 0.0
      %417 = vmatpush.msra.mxu0 0.0
      %418 = vmatpush.msra.mxu0 0.0
      %419 = vmatpush.msra.mxu0 0.0
      %420 = vmatpush.msra.mxu0 %v395
      %421 = vmatmul.f32.gmra.mxu0 %v403
      %v422 = vpop.f32.mrf.mxu0
      %v423 = vadd.f32 0.0, %v422
      %424 = vdwg.mxu0
      %425 = vmatpush.msra.mxu0 0.0
      %426 = vmatpush.msra.mxu0 0.0
      %427 = vmatpush.msra.mxu0 0.0
      %428 = vmatpush.msra.mxu0 0.0
      %429 = vmatpush.msra.mxu0 0.0
      %430 = vmatpush.msra.mxu0 0.0
      %431 = vmatpush.msra.mxu0 0.0
      %432 = vmatpush.msra.mxu0 0.0
      %433 = vmatpush.msra.mxu0 0.0
      %434 = vmatpush.msra.mxu0 0.0
      %435 = vmatpush.msra.mxu0 0.0
      %436 = vmatpush.msra.mxu0 0.0
      %437 = vmatpush.msra.mxu0 0.0
      %438 = vmatpush.msra.mxu0 0.0
      %439 = vmatpush.msra.mxu0 0.0
      %440 = vmatpush.msra.mxu0 %v396
      %441 = vmatmul.f32.gmra.mxu0 %v403
      %v442 = vpop.f32.mrf.mxu0
      %v443 = vadd.f32 0.0, %v442
      %444 = vdwg.mxu0
      %445 = vmatpush.msra.mxu0 0.0
      %446 = vmatpush.msra.mxu0 0.0
      %447 = vmatpush.msra.mxu0 0.0
      %448 = vmatpush.msra.mxu0 0.0
      %449 = vmatpush.msra.mxu0 0.0
      %450 = vmatpush.msra.mxu0 0.0
      %451 = vmatpush.msra.mxu0 0.0
      %452 = vmatpush.msra.mxu0 0.0
      %453 = vmatpush.msra.mxu0 0.0
      %454 = vmatpush.msra.mxu0 0.0
      %455 = vmatpush.msra.mxu0 0.0
      %456 = vmatpush.msra.mxu0 0.0
      %457 = vmatpush.msra.mxu0 0.0
      %458 = vmatpush.msra.mxu0 0.0
      %459 = vmatpush.msra.mxu0 0.0
      %460 = vmatpush.msra.mxu0 %v397
      %461 = vmatmul.f32.gmra.mxu0 %v403
      %v462 = vpop.f32.mrf.mxu0
      %v463 = vadd.f32 0.0, %v462
      %464 = vdwg.mxu0
      %v466 = vsel %vm401, %v372, 0
      %468 = vmatpush.msra.mxu0 0.0
      %469 = vmatpush.msra.mxu0 0.0
      %470 = vmatpush.msra.mxu0 0.0
      %471 = vmatpush.msra.mxu0 0.0
      %472 = vmatpush.msra.mxu0 0.0
      %473 = vmatpush.msra.mxu0 0.0
      %474 = vmatpush.msra.mxu0 0.0
      %475 = vmatpush.msra.mxu0 0.0
      %476 = vmatpush.msra.mxu0 0.0
      %477 = vmatpush.msra.mxu0 0.0
      %478 = vmatpush.msra.mxu0 0.0
      %479 = vmatpush.msra.mxu0 0.0
      %480 = vmatpush.msra.mxu0 0.0
      %481 = vmatpush.msra.mxu0 0.0
      %482 = vmatpush.msra.mxu0 0.0
      %483 = vmatpush.msra.mxu0 %v373
      %484 = vmatmul.f32.gmra.mxu0 %v466
      %v485 = vpop.f32.mrf.mxu0
      %v486 = vadd.f32 %v423, %v485
      %487 = vdwg.mxu0
      %488 = vmatpush.msra.mxu0 0.0
      %489 = vmatpush.msra.mxu0 0.0
      %490 = vmatpush.msra.mxu0 0.0
      %491 = vmatpush.msra.mxu0 0.0
      %492 = vmatpush.msra.mxu0 0.0
      %493 = vmatpush.msra.mxu0 0.0
      %494 = vmatpush.msra.mxu0 0.0
      %495 = vmatpush.msra.mxu0 0.0
      %496 = vmatpush.msra.mxu0 0.0
      %497 = vmatpush.msra.mxu0 0.0
      %498 = vmatpush.msra.mxu0 0.0
      %499 = vmatpush.msra.mxu0 0.0
      %500 = vmatpush.msra.mxu0 0.0
      %501 = vmatpush.msra.mxu0 0.0
      %502 = vmatpush.msra.mxu0 0.0
      %503 = vmatpush.msra.mxu0 %v374
      %504 = vmatmul.f32.gmra.mxu0 %v466
      %v505 = vpop.f32.mrf.mxu0
      %v506 = vadd.f32 %v443, %v505
      %507 = vdwg.mxu0
      %508 = vmatpush.msra.mxu0 0.0
      %509 = vmatpush.msra.mxu0 0.0
      %510 = vmatpush.msra.mxu0 0.0
      %511 = vmatpush.msra.mxu0 0.0
      %512 = vmatpush.msra.mxu0 0.0
      %513 = vmatpush.msra.mxu0 0.0
      %514 = vmatpush.msra.mxu0 0.0
      %515 = vmatpush.msra.mxu0 0.0
      %516 = vmatpush.msra.mxu0 0.0
      %517 = vmatpush.msra.mxu0 0.0
      %518 = vmatpush.msra.mxu0 0.0
      %519 = vmatpush.msra.mxu0 0.0
      %520 = vmatpush.msra.mxu0 0.0
      %521 = vmatpush.msra.mxu0 0.0
      %522 = vmatpush.msra.mxu0 0.0
      %523 = vmatpush.msra.mxu0 %v375
      %524 = vmatmul.f32.gmra.mxu0 %v466
      %v525 = vpop.f32.mrf.mxu0
      %v526 = vadd.f32 %v463, %v525
      %527 = vdwg.mxu0
      %s528 = scalar_lea.vmem %s1, 8
      %v529 = vld [vmem:[%s528] sm:$0xf]
      %530 = vrot.lane.b32.xlu0 %v378, 126
      %v531 = vpop.permute.xlu0 %530
      %532 = vrot.lane.b32.xlu0 %v379, 126
      %v533 = vpop.permute.xlu0 %532
      %534 = vrot.lane.b32.xlu0 %v380, 126
      %v535 = vpop.permute.xlu0 %534
      %536 = vrot.lane.b32.xlu0 %v381, 126
      %v537 = vpop.permute.xlu0 %536
      %vm538 = vcmask 1031168
      %v539 = vsel %vm538, %v531, %v533
      %v540 = vsel %vm538, %v533, %v535
      %v541 = vsel %vm538, %v535, %v537
      %v546 = vsel %vm401, %v529, 0
      %548 = vmatpush.msra.mxu0 0.0
      %549 = vmatpush.msra.mxu0 0.0
      %550 = vmatpush.msra.mxu0 0.0
      %551 = vmatpush.msra.mxu0 0.0
      %552 = vmatpush.msra.mxu0 0.0
      %553 = vmatpush.msra.mxu0 0.0
      %554 = vmatpush.msra.mxu0 0.0
      %555 = vmatpush.msra.mxu0 0.0
      %556 = vmatpush.msra.mxu0 0.0
      %557 = vmatpush.msra.mxu0 0.0
      %558 = vmatpush.msra.mxu0 0.0
      %559 = vmatpush.msra.mxu0 0.0
      %560 = vmatpush.msra.mxu0 0.0
      %561 = vmatpush.msra.mxu0 0.0
      %562 = vmatpush.msra.mxu0 0.0
      %563 = vmatpush.msra.mxu0 %v539
      %564 = vmatmul.f32.gmra.mxu0 %v546
      %v565 = vpop.f32.mrf.mxu0
      %v566 = vadd.f32 0.0, %v565
      %567 = vdwg.mxu0
      %568 = vmatpush.msra.mxu0 0.0
      %569 = vmatpush.msra.mxu0 0.0
      %570 = vmatpush.msra.mxu0 0.0
      %571 = vmatpush.msra.mxu0 0.0
      %572 = vmatpush.msra.mxu0 0.0
      %573 = vmatpush.msra.mxu0 0.0
      %574 = vmatpush.msra.mxu0 0.0
      %575 = vmatpush.msra.mxu0 0.0
      %576 = vmatpush.msra.mxu0 0.0
      %577 = vmatpush.msra.mxu0 0.0
      %578 = vmatpush.msra.mxu0 0.0
      %579 = vmatpush.msra.mxu0 0.0
      %580 = vmatpush.msra.mxu0 0.0
      %581 = vmatpush.msra.mxu0 0.0
      %582 = vmatpush.msra.mxu0 0.0
      %583 = vmatpush.msra.mxu0 %v540
      %584 = vmatmul.f32.gmra.mxu0 %v546
      %v585 = vpop.f32.mrf.mxu0
      %v586 = vadd.f32 0.0, %v585
      %587 = vdwg.mxu0
      %588 = vmatpush.msra.mxu0 0.0
      %589 = vmatpush.msra.mxu0 0.0
      %590 = vmatpush.msra.mxu0 0.0
      %591 = vmatpush.msra.mxu0 0.0
      %592 = vmatpush.msra.mxu0 0.0
      %593 = vmatpush.msra.mxu0 0.0
      %594 = vmatpush.msra.mxu0 0.0
      %595 = vmatpush.msra.mxu0 0.0
      %596 = vmatpush.msra.mxu0 0.0
      %597 = vmatpush.msra.mxu0 0.0
      %598 = vmatpush.msra.mxu0 0.0
      %599 = vmatpush.msra.mxu0 0.0
      %600 = vmatpush.msra.mxu0 0.0
      %601 = vmatpush.msra.mxu0 0.0
      %602 = vmatpush.msra.mxu0 0.0
      %603 = vmatpush.msra.mxu0 %v541
      %604 = vmatmul.f32.gmra.mxu0 %v546
      %v605 = vpop.f32.mrf.mxu0
      %v606 = vadd.f32 0.0, %v605
      %607 = vdwg.mxu0
      %v608 = vadd.f32 %v486, %v566
      %v609 = vadd.f32 %v506, %v586
      %v610 = vadd.f32 %v526, %v606
      %s611 = scalar_lea.vmem %s1, 12
      %v612 = vld [vmem:[%s611] sm:$0xf]
      %613 = vrot.lane.b32.xlu0 %v378, 110
      %v614 = vpop.permute.xlu0 %613
      %615 = vrot.lane.b32.xlu0 %v379, 110
      %v616 = vpop.permute.xlu0 %615
      %617 = vrot.lane.b32.xlu0 %v380, 110
      %v618 = vpop.permute.xlu0 %617
      %619 = vrot.lane.b32.xlu0 %v381, 110
      %v620 = vpop.permute.xlu0 %619
      %vm621 = vcmask 900096
      %v622 = vsel %vm621, %v614, %v616
      %v623 = vsel %vm621, %v616, %v618
      %v624 = vsel %vm621, %v618, %v620
      %v629 = vsel %vm401, %v612, 0
      %631 = vmatpush.msra.mxu0 0.0
      %632 = vmatpush.msra.mxu0 0.0
      %633 = vmatpush.msra.mxu0 0.0
      %634 = vmatpush.msra.mxu0 0.0
      %635 = vmatpush.msra.mxu0 0.0
      %636 = vmatpush.msra.mxu0 0.0
      %637 = vmatpush.msra.mxu0 0.0
      %638 = vmatpush.msra.mxu0 0.0
      %639 = vmatpush.msra.mxu0 0.0
      %640 = vmatpush.msra.mxu0 0.0
      %641 = vmatpush.msra.mxu0 0.0
      %642 = vmatpush.msra.mxu0 0.0
      %643 = vmatpush.msra.mxu0 0.0
      %644 = vmatpush.msra.mxu0 0.0
      %645 = vmatpush.msra.mxu0 0.0
      %646 = vmatpush.msra.mxu0 %v622
      %647 = vmatmul.f32.gmra.mxu0 %v629
      %v648 = vpop.f32.mrf.mxu0
      %v649 = vadd.f32 0.0, %v648
      %650 = vdwg.mxu0
      %651 = vmatpush.msra.mxu0 0.0
      %652 = vmatpush.msra.mxu0 0.0
      %653 = vmatpush.msra.mxu0 0.0
      %654 = vmatpush.msra.mxu0 0.0
      %655 = vmatpush.msra.mxu0 0.0
      %656 = vmatpush.msra.mxu0 0.0
      %657 = vmatpush.msra.mxu0 0.0
      %658 = vmatpush.msra.mxu0 0.0
      %659 = vmatpush.msra.mxu0 0.0
      %660 = vmatpush.msra.mxu0 0.0
      %661 = vmatpush.msra.mxu0 0.0
      %662 = vmatpush.msra.mxu0 0.0
      %663 = vmatpush.msra.mxu0 0.0
      %664 = vmatpush.msra.mxu0 0.0
      %665 = vmatpush.msra.mxu0 0.0
      %666 = vmatpush.msra.mxu0 %v623
      %667 = vmatmul.f32.gmra.mxu0 %v629
      %v668 = vpop.f32.mrf.mxu0
      %v669 = vadd.f32 0.0, %v668
      %670 = vdwg.mxu0
      %671 = vmatpush.msra.mxu0 0.0
      %672 = vmatpush.msra.mxu0 0.0
      %673 = vmatpush.msra.mxu0 0.0
      %674 = vmatpush.msra.mxu0 0.0
      %675 = vmatpush.msra.mxu0 0.0
      %676 = vmatpush.msra.mxu0 0.0
      %677 = vmatpush.msra.mxu0 0.0
      %678 = vmatpush.msra.mxu0 0.0
      %679 = vmatpush.msra.mxu0 0.0
      %680 = vmatpush.msra.mxu0 0.0
      %681 = vmatpush.msra.mxu0 0.0
      %682 = vmatpush.msra.mxu0 0.0
      %683 = vmatpush.msra.mxu0 0.0
      %684 = vmatpush.msra.mxu0 0.0
      %685 = vmatpush.msra.mxu0 0.0
      %686 = vmatpush.msra.mxu0 %v624
      %687 = vmatmul.f32.gmra.mxu0 %v629
      %v688 = vpop.f32.mrf.mxu0
      %v689 = vadd.f32 0.0, %v688
      %690 = vdwg.mxu0
      %v691 = vadd.f32 %v608, %v649
      %v692 = vadd.f32 %v609, %v669
      %v693 = vadd.f32 %v610, %v689
      %s694 = scalar_lea.vmem %s1, 16
      %v695 = vld [vmem:[%s694] sm:$0xf]
      %696 = vrot.lane.b32.xlu0 %v378, 109
      %v697 = vpop.permute.xlu0 %696
      %698 = vrot.lane.b32.xlu0 %v379, 109
      %v699 = vpop.permute.xlu0 %698
      %700 = vrot.lane.b32.xlu0 %v380, 109
      %v701 = vpop.permute.xlu0 %700
      %702 = vrot.lane.b32.xlu0 %v381, 109
      %v703 = vpop.permute.xlu0 %702
      %vm704 = vcmask 891904
      %v705 = vsel %vm704, %v697, %v699
      %v706 = vsel %vm704, %v699, %v701
      %v707 = vsel %vm704, %v701, %v703
      %v712 = vsel %vm401, %v695, 0
      %714 = vmatpush.msra.mxu0 0.0
      %715 = vmatpush.msra.mxu0 0.0
      %716 = vmatpush.msra.mxu0 0.0
      %717 = vmatpush.msra.mxu0 0.0
      %718 = vmatpush.msra.mxu0 0.0
      %719 = vmatpush.msra.mxu0 0.0
      %720 = vmatpush.msra.mxu0 0.0
      %721 = vmatpush.msra.mxu0 0.0
      %722 = vmatpush.msra.mxu0 0.0
      %723 = vmatpush.msra.mxu0 0.0
      %724 = vmatpush.msra.mxu0 0.0
      %725 = vmatpush.msra.mxu0 0.0
      %726 = vmatpush.msra.mxu0 0.0
      %727 = vmatpush.msra.mxu0 0.0
      %728 = vmatpush.msra.mxu0 0.0
      %729 = vmatpush.msra.mxu0 %v705
      %730 = vmatmul.f32.gmra.mxu0 %v712
      %v731 = vpop.f32.mrf.mxu0
      %v732 = vadd.f32 0.0, %v731
      %733 = vdwg.mxu0
      %734 = vmatpush.msra.mxu0 0.0
      %735 = vmatpush.msra.mxu0 0.0
      %736 = vmatpush.msra.mxu0 0.0
      %737 = vmatpush.msra.mxu0 0.0
      %738 = vmatpush.msra.mxu0 0.0
      %739 = vmatpush.msra.mxu0 0.0
      %740 = vmatpush.msra.mxu0 0.0
      %741 = vmatpush.msra.mxu0 0.0
      %742 = vmatpush.msra.mxu0 0.0
      %743 = vmatpush.msra.mxu0 0.0
      %744 = vmatpush.msra.mxu0 0.0
      %745 = vmatpush.msra.mxu0 0.0
      %746 = vmatpush.msra.mxu0 0.0
      %747 = vmatpush.msra.mxu0 0.0
      %748 = vmatpush.msra.mxu0 0.0
      %749 = vmatpush.msra.mxu0 %v706
      %750 = vmatmul.f32.gmra.mxu0 %v712
      %v751 = vpop.f32.mrf.mxu0
      %v752 = vadd.f32 0.0, %v751
      %753 = vdwg.mxu0
      %754 = vmatpush.msra.mxu0 0.0
      %755 = vmatpush.msra.mxu0 0.0
      %756 = vmatpush.msra.mxu0 0.0
      %757 = vmatpush.msra.mxu0 0.0
      %758 = vmatpush.msra.mxu0 0.0
      %759 = vmatpush.msra.mxu0 0.0
      %760 = vmatpush.msra.mxu0 0.0
      %761 = vmatpush.msra.mxu0 0.0
      %762 = vmatpush.msra.mxu0 0.0
      %763 = vmatpush.msra.mxu0 0.0
      %764 = vmatpush.msra.mxu0 0.0
      %765 = vmatpush.msra.mxu0 0.0
      %766 = vmatpush.msra.mxu0 0.0
      %767 = vmatpush.msra.mxu0 0.0
      %768 = vmatpush.msra.mxu0 0.0
      %769 = vmatpush.msra.mxu0 %v707
      %770 = vmatmul.f32.gmra.mxu0 %v712
      %v771 = vpop.f32.mrf.mxu0
      %v772 = vadd.f32 0.0, %v771
      %773 = vdwg.mxu0
      %v774 = vadd.f32 %v691, %v732
      %v775 = vadd.f32 %v692, %v752
      %v776 = vadd.f32 %v693, %v772
      %s777 = scalar_lea.vmem %s1, 20
      %v778 = vld [vmem:[%s777] sm:$0xf]
      %779 = vrot.lane.b32.xlu0 %v378, 108
      %v780 = vpop.permute.xlu0 %779
      %781 = vrot.lane.b32.xlu0 %v379, 108
      %v782 = vpop.permute.xlu0 %781
      %783 = vrot.lane.b32.xlu0 %v380, 108
      %v784 = vpop.permute.xlu0 %783
      %785 = vrot.lane.b32.xlu0 %v381, 108
      %v786 = vpop.permute.xlu0 %785
      %vm787 = vcmask 883712
      %v788 = vsel %vm787, %v780, %v782
      %v789 = vsel %vm787, %v782, %v784
      %v790 = vsel %vm787, %v784, %v786
      %v795 = vsel %vm401, %v778, 0
      %797 = vmatpush.msra.mxu0 0.0
      %798 = vmatpush.msra.mxu0 0.0
      %799 = vmatpush.msra.mxu0 0.0
      %800 = vmatpush.msra.mxu0 0.0
      %801 = vmatpush.msra.mxu0 0.0
      %802 = vmatpush.msra.mxu0 0.0
      %803 = vmatpush.msra.mxu0 0.0
      %804 = vmatpush.msra.mxu0 0.0
      %805 = vmatpush.msra.mxu0 0.0
      %806 = vmatpush.msra.mxu0 0.0
      %807 = vmatpush.msra.mxu0 0.0
      %808 = vmatpush.msra.mxu0 0.0
      %809 = vmatpush.msra.mxu0 0.0
      %810 = vmatpush.msra.mxu0 0.0
      %811 = vmatpush.msra.mxu0 0.0
      %812 = vmatpush.msra.mxu0 %v788
      %813 = vmatmul.f32.gmra.mxu0 %v795
      %v814 = vpop.f32.mrf.mxu0
      %v815 = vadd.f32 0.0, %v814
      %816 = vdwg.mxu0
      %817 = vmatpush.msra.mxu0 0.0
      %818 = vmatpush.msra.mxu0 0.0
      %819 = vmatpush.msra.mxu0 0.0
      %820 = vmatpush.msra.mxu0 0.0
      %821 = vmatpush.msra.mxu0 0.0
      %822 = vmatpush.msra.mxu0 0.0
      %823 = vmatpush.msra.mxu0 0.0
      %824 = vmatpush.msra.mxu0 0.0
      %825 = vmatpush.msra.mxu0 0.0
      %826 = vmatpush.msra.mxu0 0.0
      %827 = vmatpush.msra.mxu0 0.0
      %828 = vmatpush.msra.mxu0 0.0
      %829 = vmatpush.msra.mxu0 0.0
      %830 = vmatpush.msra.mxu0 0.0
      %831 = vmatpush.msra.mxu0 0.0
      %832 = vmatpush.msra.mxu0 %v789
      %833 = vmatmul.f32.gmra.mxu0 %v795
      %v834 = vpop.f32.mrf.mxu0
      %v835 = vadd.f32 0.0, %v834
      %836 = vdwg.mxu0
      %837 = vmatpush.msra.mxu0 0.0
      %838 = vmatpush.msra.mxu0 0.0
      %839 = vmatpush.msra.mxu0 0.0
      %840 = vmatpush.msra.mxu0 0.0
      %841 = vmatpush.msra.mxu0 0.0
      %842 = vmatpush.msra.mxu0 0.0
      %843 = vmatpush.msra.mxu0 0.0
      %844 = vmatpush.msra.mxu0 0.0
      %845 = vmatpush.msra.mxu0 0.0
      %846 = vmatpush.msra.mxu0 0.0
      %847 = vmatpush.msra.mxu0 0.0
      %848 = vmatpush.msra.mxu0 0.0
      %849 = vmatpush.msra.mxu0 0.0
      %850 = vmatpush.msra.mxu0 0.0
      %851 = vmatpush.msra.mxu0 0.0
      %852 = vmatpush.msra.mxu0 %v790
      %853 = vmatmul.f32.gmra.mxu0 %v795
      %v854 = vpop.f32.mrf.mxu0
      %v855 = vadd.f32 0.0, %v854
      %856 = vdwg.mxu0
      %v857 = vadd.f32 %v774, %v815
      %v858 = vadd.f32 %v775, %v835
      %v859 = vadd.f32 %v776, %v855
      %s860 = scalar_lea.vmem %s1, 24
      %v861 = vld [vmem:[%s860] sm:$0xf]
      %862 = vrot.lane.b32.xlu0 %v378, 92
      %v863 = vpop.permute.xlu0 %862
      %864 = vrot.lane.b32.xlu0 %v379, 92
      %v865 = vpop.permute.xlu0 %864
      %866 = vrot.lane.b32.xlu0 %v380, 92
      %v867 = vpop.permute.xlu0 %866
      %868 = vrot.lane.b32.xlu0 %v381, 92
      %v869 = vpop.permute.xlu0 %868
      %vm870 = vcmask 752640
      %v871 = vsel %vm870, %v863, %v865
      %v872 = vsel %vm870, %v865, %v867
      %v873 = vsel %vm870, %v867, %v869
      %v878 = vsel %vm401, %v861, 0
      %880 = vmatpush.msra.mxu0 0.0
      %881 = vmatpush.msra.mxu0 0.0
      %882 = vmatpush.msra.mxu0 0.0
      %883 = vmatpush.msra.mxu0 0.0
      %884 = vmatpush.msra.mxu0 0.0
      %885 = vmatpush.msra.mxu0 0.0
      %886 = vmatpush.msra.mxu0 0.0
      %887 = vmatpush.msra.mxu0 0.0
      %888 = vmatpush.msra.mxu0 0.0
      %889 = vmatpush.msra.mxu0 0.0
      %890 = vmatpush.msra.mxu0 0.0
      %891 = vmatpush.msra.mxu0 0.0
      %892 = vmatpush.msra.mxu0 0.0
      %893 = vmatpush.msra.mxu0 0.0
      %894 = vmatpush.msra.mxu0 0.0
      %895 = vmatpush.msra.mxu0 %v871
      %896 = vmatmul.f32.gmra.mxu0 %v878
      %v897 = vpop.f32.mrf.mxu0
      %v898 = vadd.f32 0.0, %v897
      %899 = vdwg.mxu0
      %900 = vmatpush.msra.mxu0 0.0
      %901 = vmatpush.msra.mxu0 0.0
      %902 = vmatpush.msra.mxu0 0.0
      %903 = vmatpush.msra.mxu0 0.0
      %904 = vmatpush.msra.mxu0 0.0
      %905 = vmatpush.msra.mxu0 0.0
      %906 = vmatpush.msra.mxu0 0.0
      %907 = vmatpush.msra.mxu0 0.0
      %908 = vmatpush.msra.mxu0 0.0
      %909 = vmatpush.msra.mxu0 0.0
      %910 = vmatpush.msra.mxu0 0.0
      %911 = vmatpush.msra.mxu0 0.0
      %912 = vmatpush.msra.mxu0 0.0
      %913 = vmatpush.msra.mxu0 0.0
      %914 = vmatpush.msra.mxu0 0.0
      %915 = vmatpush.msra.mxu0 %v872
      %916 = vmatmul.f32.gmra.mxu0 %v878
      %v917 = vpop.f32.mrf.mxu0
      %v918 = vadd.f32 0.0, %v917
      %919 = vdwg.mxu0
      %920 = vmatpush.msra.mxu0 0.0
      %921 = vmatpush.msra.mxu0 0.0
      %922 = vmatpush.msra.mxu0 0.0
      %923 = vmatpush.msra.mxu0 0.0
      %924 = vmatpush.msra.mxu0 0.0
      %925 = vmatpush.msra.mxu0 0.0
      %926 = vmatpush.msra.mxu0 0.0
      %927 = vmatpush.msra.mxu0 0.0
      %928 = vmatpush.msra.mxu0 0.0
      %929 = vmatpush.msra.mxu0 0.0
      %930 = vmatpush.msra.mxu0 0.0
      %931 = vmatpush.msra.mxu0 0.0
      %932 = vmatpush.msra.mxu0 0.0
      %933 = vmatpush.msra.mxu0 0.0
      %934 = vmatpush.msra.mxu0 0.0
      %935 = vmatpush.msra.mxu0 %v873
      %936 = vmatmul.f32.gmra.mxu0 %v878
      %v937 = vpop.f32.mrf.mxu0
      %v938 = vadd.f32 0.0, %v937
      %939 = vdwg.mxu0
      %v940 = vadd.f32 %v857, %v898
      %v941 = vadd.f32 %v858, %v918
      %v942 = vadd.f32 %v859, %v938
      %s943 = scalar_lea.vmem %s1, 28
      %v944 = vld [vmem:[%s943] sm:$0xf]
      %945 = vrot.lane.b32.xlu0 %v378, 91
      %v946 = vpop.permute.xlu0 %945
      %947 = vrot.lane.b32.xlu0 %v379, 91
      %v948 = vpop.permute.xlu0 %947
      %949 = vrot.lane.b32.xlu0 %v380, 91
      %v950 = vpop.permute.xlu0 %949
      %951 = vrot.lane.b32.xlu0 %v381, 91
      %v952 = vpop.permute.xlu0 %951
      %vm953 = vcmask 744448
      %v954 = vsel %vm953, %v946, %v948
      %v955 = vsel %vm953, %v948, %v950
      %v956 = vsel %vm953, %v950, %v952
      %v961 = vsel %vm401, %v944, 0
      %963 = vmatpush.msra.mxu0 0.0
      %964 = vmatpush.msra.mxu0 0.0
      %965 = vmatpush.msra.mxu0 0.0
      %966 = vmatpush.msra.mxu0 0.0
      %967 = vmatpush.msra.mxu0 0.0
      %968 = vmatpush.msra.mxu0 0.0
      %969 = vmatpush.msra.mxu0 0.0
      %970 = vmatpush.msra.mxu0 0.0
      %971 = vmatpush.msra.mxu0 0.0
      %972 = vmatpush.msra.mxu0 0.0
      %973 = vmatpush.msra.mxu0 0.0
      %974 = vmatpush.msra.mxu0 0.0
      %975 = vmatpush.msra.mxu0 0.0
      %976 = vmatpush.msra.mxu0 0.0
      %977 = vmatpush.msra.mxu0 0.0
      %978 = vmatpush.msra.mxu0 %v954
      %979 = vmatmul.f32.gmra.mxu0 %v961
      %v980 = vpop.f32.mrf.mxu0
      %v981 = vadd.f32 0.0, %v980
      %982 = vdwg.mxu0
      %983 = vmatpush.msra.mxu0 0.0
      %984 = vmatpush.msra.mxu0 0.0
      %985 = vmatpush.msra.mxu0 0.0
      %986 = vmatpush.msra.mxu0 0.0
      %987 = vmatpush.msra.mxu0 0.0
      %988 = vmatpush.msra.mxu0 0.0
      %989 = vmatpush.msra.mxu0 0.0
      %990 = vmatpush.msra.mxu0 0.0
      %991 = vmatpush.msra.mxu0 0.0
      %992 = vmatpush.msra.mxu0 0.0
      %993 = vmatpush.msra.mxu0 0.0
      %994 = vmatpush.msra.mxu0 0.0
      %995 = vmatpush.msra.mxu0 0.0
      %996 = vmatpush.msra.mxu0 0.0
      %997 = vmatpush.msra.mxu0 0.0
      %998 = vmatpush.msra.mxu0 %v955
      %999 = vmatmul.f32.gmra.mxu0 %v961
      %v1000 = vpop.f32.mrf.mxu0
      %v1001 = vadd.f32 0.0, %v1000
      %1002 = vdwg.mxu0
      %1003 = vmatpush.msra.mxu0 0.0
      %1004 = vmatpush.msra.mxu0 0.0
      %1005 = vmatpush.msra.mxu0 0.0
      %1006 = vmatpush.msra.mxu0 0.0
      %1007 = vmatpush.msra.mxu0 0.0
      %1008 = vmatpush.msra.mxu0 0.0
      %1009 = vmatpush.msra.mxu0 0.0
      %1010 = vmatpush.msra.mxu0 0.0
      %1011 = vmatpush.msra.mxu0 0.0
      %1012 = vmatpush.msra.mxu0 0.0
      %1013 = vmatpush.msra.mxu0 0.0
      %1014 = vmatpush.msra.mxu0 0.0
      %1015 = vmatpush.msra.mxu0 0.0
      %1016 = vmatpush.msra.mxu0 0.0
      %1017 = vmatpush.msra.mxu0 0.0
      %1018 = vmatpush.msra.mxu0 %v956
      %1019 = vmatmul.f32.gmra.mxu0 %v961
      %v1020 = vpop.f32.mrf.mxu0
      %v1021 = vadd.f32 0.0, %v1020
      %1022 = vdwg.mxu0
      %v1023 = vadd.f32 %v940, %v981
      %v1024 = vadd.f32 %v941, %v1001
      %v1025 = vadd.f32 %v942, %v1021
      %s1026 = scalar_lea.vmem %s1, 32
      %v1027 = vld [vmem:[%s1026] sm:$0xf]
      %1028 = vrot.lane.b32.xlu0 %v378, 90
      %v1029 = vpop.permute.xlu0 %1028
      %1030 = vrot.lane.b32.xlu0 %v379, 90
      %v1031 = vpop.permute.xlu0 %1030
      %1032 = vrot.lane.b32.xlu0 %v380, 90
      %v1033 = vpop.permute.xlu0 %1032
      %1034 = vrot.lane.b32.xlu0 %v381, 90
      %v1035 = vpop.permute.xlu0 %1034
      %vm1036 = vcmask 736256
      %v1037 = vsel %vm1036, %v1029, %v1031
      %v1038 = vsel %vm1036, %v1031, %v1033
      %v1039 = vsel %vm1036, %v1033, %v1035
      %v1044 = vsel %vm401, %v1027, 0
      %1046 = vmatpush.msra.mxu0 0.0
      %1047 = vmatpush.msra.mxu0 0.0
      %1048 = vmatpush.msra.mxu0 0.0
      %1049 = vmatpush.msra.mxu0 0.0
      %1050 = vmatpush.msra.mxu0 0.0
      %1051 = vmatpush.msra.mxu0 0.0
      %1052 = vmatpush.msra.mxu0 0.0
      %1053 = vmatpush.msra.mxu0 0.0
      %1054 = vmatpush.msra.mxu0 0.0
      %1055 = vmatpush.msra.mxu0 0.0
      %1056 = vmatpush.msra.mxu0 0.0
      %1057 = vmatpush.msra.mxu0 0.0
      %1058 = vmatpush.msra.mxu0 0.0
      %1059 = vmatpush.msra.mxu0 0.0
      %1060 = vmatpush.msra.mxu0 0.0
      %1061 = vmatpush.msra.mxu0 %v1037
      %1062 = vmatmul.f32.gmra.mxu0 %v1044
      %v1063 = vpop.f32.mrf.mxu0
      %v1064 = vadd.f32 0.0, %v1063
      %1065 = vdwg.mxu0
      %1066 = vmatpush.msra.mxu0 0.0
      %1067 = vmatpush.msra.mxu0 0.0
      %1068 = vmatpush.msra.mxu0 0.0
      %1069 = vmatpush.msra.mxu0 0.0
      %1070 = vmatpush.msra.mxu0 0.0
      %1071 = vmatpush.msra.mxu0 0.0
      %1072 = vmatpush.msra.mxu0 0.0
      %1073 = vmatpush.msra.mxu0 0.0
      %1074 = vmatpush.msra.mxu0 0.0
      %1075 = vmatpush.msra.mxu0 0.0
      %1076 = vmatpush.msra.mxu0 0.0
      %1077 = vmatpush.msra.mxu0 0.0
      %1078 = vmatpush.msra.mxu0 0.0
      %1079 = vmatpush.msra.mxu0 0.0
      %1080 = vmatpush.msra.mxu0 0.0
      %1081 = vmatpush.msra.mxu0 %v1038
      %1082 = vmatmul.f32.gmra.mxu0 %v1044
      %v1083 = vpop.f32.mrf.mxu0
      %v1084 = vadd.f32 0.0, %v1083
      %1085 = vdwg.mxu0
      %1086 = vmatpush.msra.mxu0 0.0
      %1087 = vmatpush.msra.mxu0 0.0
      %1088 = vmatpush.msra.mxu0 0.0
      %1089 = vmatpush.msra.mxu0 0.0
      %1090 = vmatpush.msra.mxu0 0.0
      %1091 = vmatpush.msra.mxu0 0.0
      %1092 = vmatpush.msra.mxu0 0.0
      %1093 = vmatpush.msra.mxu0 0.0
      %1094 = vmatpush.msra.mxu0 0.0
      %1095 = vmatpush.msra.mxu0 0.0
      %1096 = vmatpush.msra.mxu0 0.0
      %1097 = vmatpush.msra.mxu0 0.0
      %1098 = vmatpush.msra.mxu0 0.0
      %1099 = vmatpush.msra.mxu0 0.0
      %1100 = vmatpush.msra.mxu0 0.0
      %1101 = vmatpush.msra.mxu0 %v1039
      %1102 = vmatmul.f32.gmra.mxu0 %v1044
      %v1103 = vpop.f32.mrf.mxu0
      %v1104 = vadd.f32 0.0, %v1103
      %1105 = vdwg.mxu0
      %v1106 = vadd.f32 %v1023, %v1064
      %v1107 = vadd.f32 %v1024, %v1084
      %v1108 = vadd.f32 %v1025, %v1104
      %v1109 = vld [vmem:[%s2] sm:$0xf]
      %1111 = vset.pattern.permute.xlu0 0
      %1112 = vperm.xlu0 %1111, %v1109
      %v1113 = vpop.permute.xlu0 %1112
      %v1115 = vadd.f32 %v1106, %v1113
      %v1116 = vadd.f32 %v1107, %v1113
      %v1117 = vadd.f32 %v1108, %v1113
      %v1118 = vsub.f32 0.0, %v1115
      %v1119 = vsub.f32 0.0, %v1116
      %v1120 = vsub.f32 0.0, %v1117
      %v1121 = vmul.f32 %v1118, 1.442695
      %v1122 = vpow.pop %v1121
      %v1123 = vmul.f32 %v1119, 1.442695
      %v1124 = vpow.pop %v1123
      %v1125 = vmul.f32 %v1120, 1.442695
      %v1126 = vpow.pop %v1125
      %v1127 = vadd.f32 %v1122, 1.0
      %v1128 = vadd.f32 %v1124, 1.0
      %v1129 = vadd.f32 %v1126, 1.0
      %v1130 = vrcp.pop %v1127
      %v1131 = vrcp.pop %v1128
      %v1132 = vrcp.pop %v1129
      %v1133 = vmul.f32 %v1115, %v1130
      %v1134 = vmul.f32 %v1116, %v1131
      %v1135 = vmul.f32 %v1117, %v1132
      %v1136 = vld [vmem:[%s5] sm:$0x7]
      %v1138 = vperm.slane %v1136, 0
      %v1139 = vperm.slane %v1136, 1
      %v1140 = vperm.slane %v1136, 2
      %v1144 = vmul.f32 %v1133, %v1138
      %v1145 = vmul.f32 %v1134, %v1139
      %v1146 = vmul.f32 %v1135, %v1140
      %1147 = vst [vmem:[#allocation3] sm:$0xff] 0.0
      %1148 = vst [vmem:[#allocation3 + $0x8] sm:$0xff] 0.0
      %1149 = vst [vmem:[#allocation3 + $0x10] sm:$0xf] 0.0
      %v1152 = vrot.slane %v1145, 4
      %vm1153 = vcmask 1043456
      %v1154 = vsel %vm1153, %v1144, %v1152
      %1156 = vst [vmem:[#allocation3 + $0x4] sm:$0xff] %v1154
      %1157 = vst [vmem:[#allocation3 + $0xc] sm:$0xf] %v1146
      %v1158 = vld [vmem:[%s3] sm:$0xff]
      %v1159 = vld [vmem:[#allocation3] sm:$0xff]
      %v1160 = vld [vmem:[#allocation3 + $0x8] sm:$0xff]
      %s1161 = scalar_lea.vmem %s3, 8
      %v1162 = vld [vmem:[%s1161] sm:$0xff]
      %1165 = vst [vmem:[#allocation1] ss:$2 sm:$0xff] %v1159
      %s1166 = scalar_lea.vmem [#allocation1], 16
      %1167 = vst [vmem:[%s1166] ss:$2 sm:$0xff] %v1160
      %v1168 = vld.sshfl [vmem:[#allocation1] sm:$0xff pattern:$0x75316420]
      %v1169 = vld.sshfl [vmem:[#allocation1 + $0x8] sm:$0xff pattern:$0x75316420]
      %v1170 = vld.sshfl [vmem:[#allocation1 + $0x10] sm:$0xff pattern:$0x75316420]
      %v1171 = vld.sshfl [vmem:[#allocation1 + $0x18] sm:$0xff pattern:$0x75316420]
      %1172 = vrot.lane.b32.xlu0 %v1168, 18
      %v1173 = vpop.permute.xlu0 %1172
      %1174 = vrot.lane.b32.xlu0 %v1169, 18
      %v1175 = vpop.permute.xlu0 %1174
      %1176 = vrot.lane.b32.xlu0 %v1170, 18
      %v1177 = vpop.permute.xlu0 %1176
      %1178 = vrot.lane.b32.xlu0 %v1171, 18
      %v1179 = vpop.permute.xlu0 %1178
      %vm1180 = vcmask 146432
      %v1181 = vsel %vm1180, %v1173, %v1175
      %v1182 = vsel %vm1180, %v1175, %v1177
      %v1183 = vsel %vm1180, %v1177, %v1179
      %vm1184 = vcmask 31744
      %v1186 = vsel %vm1184, %v1162, 0
      %v1188 = vsel %vm1153, %v1181, 0
      %v1190 = vsel %vm1153, %v1182, 0
      %v1192 = vsel %vm1153, %v1183, 0
      %1194 = vmatpush.msra.mxu0 0.0
      %1195 = vmatpush.msra.mxu0 0.0
      %1196 = vmatpush.msra.mxu0 0.0
      %1197 = vmatpush.msra.mxu0 0.0
      %1198 = vmatpush.msra.mxu0 0.0
      %1199 = vmatpush.msra.mxu0 0.0
      %1200 = vmatpush.msra.mxu0 0.0
      %1201 = vmatpush.msra.mxu0 0.0
      %1202 = vmatpush.msra.mxu0 0.0
      %1203 = vmatpush.msra.mxu0 0.0
      %1204 = vmatpush.msra.mxu0 0.0
      %1205 = vmatpush.msra.mxu0 0.0
      %1206 = vmatpush.msra.mxu0 0.0
      %1207 = vmatpush.msra.mxu0 0.0
      %1208 = vmatpush.msra.mxu0 0.0
      %1209 = vmatpush.msra.mxu0 %v1188
      %1210 = vmatmul.f32.gmra.mxu0 %v1186
      %v1211 = vpop.f32.mrf.mxu0
      %v1212 = vadd.f32 0.0, %v1211
      %1213 = vdwg.mxu0
      %1214 = vmatpush.msra.mxu0 0.0
      %1215 = vmatpush.msra.mxu0 0.0
      %1216 = vmatpush.msra.mxu0 0.0
      %1217 = vmatpush.msra.mxu0 0.0
      %1218 = vmatpush.msra.mxu0 0.0
      %1219 = vmatpush.msra.mxu0 0.0
      %1220 = vmatpush.msra.mxu0 0.0
      %1221 = vmatpush.msra.mxu0 0.0
      %1222 = vmatpush.msra.mxu0 0.0
      %1223 = vmatpush.msra.mxu0 0.0
      %1224 = vmatpush.msra.mxu0 0.0
      %1225 = vmatpush.msra.mxu0 0.0
      %1226 = vmatpush.msra.mxu0 0.0
      %1227 = vmatpush.msra.mxu0 0.0
      %1228 = vmatpush.msra.mxu0 0.0
      %1229 = vmatpush.msra.mxu0 %v1190
      %1230 = vmatmul.f32.gmra.mxu0 %v1186
      %v1231 = vpop.f32.mrf.mxu0
      %v1232 = vadd.f32 0.0, %v1231
      %1233 = vdwg.mxu0
      %1234 = vmatpush.msra.mxu0 0.0
      %1235 = vmatpush.msra.mxu0 0.0
      %1236 = vmatpush.msra.mxu0 0.0
      %1237 = vmatpush.msra.mxu0 0.0
      %1238 = vmatpush.msra.mxu0 0.0
      %1239 = vmatpush.msra.mxu0 0.0
      %1240 = vmatpush.msra.mxu0 0.0
      %1241 = vmatpush.msra.mxu0 0.0
      %1242 = vmatpush.msra.mxu0 0.0
      %1243 = vmatpush.msra.mxu0 0.0
      %1244 = vmatpush.msra.mxu0 0.0
      %1245 = vmatpush.msra.mxu0 0.0
      %1246 = vmatpush.msra.mxu0 0.0
      %1247 = vmatpush.msra.mxu0 0.0
      %1248 = vmatpush.msra.mxu0 0.0
      %1249 = vmatpush.msra.mxu0 %v1192
      %1250 = vmatmul.f32.gmra.mxu0 %v1186
      %v1251 = vpop.f32.mrf.mxu0
      %v1252 = vadd.f32 0.0, %v1251
      %1253 = vdwg.mxu0
      %1254 = vst [vmem:[#allocation1] ss:$2 sm:$0xff] %v1159
      %s1255 = scalar_lea.vmem [#allocation1], 16
      %1256 = vst [vmem:[%s1255] ss:$2 sm:$0xff] %v1160
      %v1257 = vld.sshfl [vmem:[#allocation1] sm:$0xff pattern:$0x75316420]
      %v1258 = vld.sshfl [vmem:[#allocation1 + $0x8] sm:$0xff pattern:$0x75316420]
      %v1259 = vld.sshfl [vmem:[#allocation1 + $0x10] sm:$0xff pattern:$0x75316420]
      %v1260 = vld.sshfl [vmem:[#allocation1 + $0x18] sm:$0xff pattern:$0x75316420]
      %1261 = vrot.lane.b32.xlu0 %v1257, 19
      %v1262 = vpop.permute.xlu0 %1261
      %1263 = vrot.lane.b32.xlu0 %v1258, 19
      %v1264 = vpop.permute.xlu0 %1263
      %1265 = vrot.lane.b32.xlu0 %v1259, 19
      %v1266 = vpop.permute.xlu0 %1265
      %1267 = vrot.lane.b32.xlu0 %v1260, 19
      %v1268 = vpop.permute.xlu0 %1267
      %vm1269 = vcmask 154624
      %v1270 = vsel %vm1269, %v1262, %v1264
      %v1271 = vsel %vm1269, %v1264, %v1266
      %v1272 = vsel %vm1269, %v1266, %v1268
      %v1274 = vsel %vm1184, %v1158, 0
      %v1276 = vsel %vm1153, %v1270, 0
      %v1278 = vsel %vm1153, %v1271, 0
      %v1280 = vsel %vm1153, %v1272, 0
      %1282 = vmatpush.msra.mxu0 0.0
      %1283 = vmatpush.msra.mxu0 0.0
      %1284 = vmatpush.msra.mxu0 0.0
      %1285 = vmatpush.msra.mxu0 0.0
      %1286 = vmatpush.msra.mxu0 0.0
      %1287 = vmatpush.msra.mxu0 0.0
      %1288 = vmatpush.msra.mxu0 0.0
      %1289 = vmatpush.msra.mxu0 0.0
      %1290 = vmatpush.msra.mxu0 0.0
      %1291 = vmatpush.msra.mxu0 0.0
      %1292 = vmatpush.msra.mxu0 0.0
      %1293 = vmatpush.msra.mxu0 0.0
      %1294 = vmatpush.msra.mxu0 0.0
      %1295 = vmatpush.msra.mxu0 0.0
      %1296 = vmatpush.msra.mxu0 0.0
      %1297 = vmatpush.msra.mxu0 %v1276
      %1298 = vmatmul.f32.gmra.mxu0 %v1274
      %v1299 = vpop.f32.mrf.mxu0
      %v1300 = vadd.f32 %v1212, %v1299
      %1301 = vdwg.mxu0
      %1302 = vmatpush.msra.mxu0 0.0
      %1303 = vmatpush.msra.mxu0 0.0
      %1304 = vmatpush.msra.mxu0 0.0
      %1305 = vmatpush.msra.mxu0 0.0
      %1306 = vmatpush.msra.mxu0 0.0
      %1307 = vmatpush.msra.mxu0 0.0
      %1308 = vmatpush.msra.mxu0 0.0
      %1309 = vmatpush.msra.mxu0 0.0
      %1310 = vmatpush.msra.mxu0 0.0
      %1311 = vmatpush.msra.mxu0 0.0
      %1312 = vmatpush.msra.mxu0 0.0
      %1313 = vmatpush.msra.mxu0 0.0
      %1314 = vmatpush.msra.mxu0 0.0
      %1315 = vmatpush.msra.mxu0 0.0
      %1316 = vmatpush.msra.mxu0 0.0
      %1317 = vmatpush.msra.mxu0 %v1278
      %1318 = vmatmul.f32.gmra.mxu0 %v1274
      %v1319 = vpop.f32.mrf.mxu0
      %v1320 = vadd.f32 %v1232, %v1319
      %1321 = vdwg.mxu0
      %1322 = vmatpush.msra.mxu0 0.0
      %1323 = vmatpush.msra.mxu0 0.0
      %1324 = vmatpush.msra.mxu0 0.0
      %1325 = vmatpush.msra.mxu0 0.0
      %1326 = vmatpush.msra.mxu0 0.0
      %1327 = vmatpush.msra.mxu0 0.0
      %1328 = vmatpush.msra.mxu0 0.0
      %1329 = vmatpush.msra.mxu0 0.0
      %1330 = vmatpush.msra.mxu0 0.0
      %1331 = vmatpush.msra.mxu0 0.0
      %1332 = vmatpush.msra.mxu0 0.0
      %1333 = vmatpush.msra.mxu0 0.0
      %1334 = vmatpush.msra.mxu0 0.0
      %1335 = vmatpush.msra.mxu0 0.0
      %1336 = vmatpush.msra.mxu0 0.0
      %1337 = vmatpush.msra.mxu0 %v1280
      %1338 = vmatmul.f32.gmra.mxu0 %v1274
      %v1339 = vpop.f32.mrf.mxu0
      %v1340 = vadd.f32 %v1252, %v1339
      %1341 = vdwg.mxu0
      %s1342 = scalar_lea.vmem %s3, 16
      %v1343 = vld [vmem:[%s1342] sm:$0xff]
      %v1344 = vld [vmem:[#allocation3] sm:$0xff]
      %v1345 = vld [vmem:[#allocation3 + $0x8] sm:$0xff]
      %1348 = vst [vmem:[#allocation1] ss:$2 sm:$0xff] %v1344
      %s1349 = scalar_lea.vmem [#allocation1], 16
      %1350 = vst [vmem:[%s1349] ss:$2 sm:$0xff] %v1345
      %v1351 = vld.sshfl [vmem:[#allocation1] sm:$0xff pattern:$0x75316420]
      %v1352 = vld.sshfl [vmem:[#allocation1 + $0x8] sm:$0xff pattern:$0x75316420]
      %v1353 = vld.sshfl [vmem:[#allocation1 + $0x10] sm:$0xff pattern:$0x75316420]
      %v1354 = vld.sshfl [vmem:[#allocation1 + $0x18] sm:$0xff pattern:$0x75316420]
      %1355 = vrot.lane.b32.xlu0 %v1351, 17
      %v1356 = vpop.permute.xlu0 %1355
      %1357 = vrot.lane.b32.xlu0 %v1352, 17
      %v1358 = vpop.permute.xlu0 %1357
      %1359 = vrot.lane.b32.xlu0 %v1353, 17
      %v1360 = vpop.permute.xlu0 %1359
      %1361 = vrot.lane.b32.xlu0 %v1354, 17
      %v1362 = vpop.permute.xlu0 %1361
      %vm1363 = vcmask 138240
      %v1364 = vsel %vm1363, %v1356, %v1358
      %v1365 = vsel %vm1363, %v1358, %v1360
      %v1366 = vsel %vm1363, %v1360, %v1362
      %v1368 = vsel %vm1184, %v1343, 0
      %v1370 = vsel %vm1153, %v1364, 0
      %v1372 = vsel %vm1153, %v1365, 0
      %v1374 = vsel %vm1153, %v1366, 0
      %1376 = vmatpush.msra.mxu0 0.0
      %1377 = vmatpush.msra.mxu0 0.0
      %1378 = vmatpush.msra.mxu0 0.0
      %1379 = vmatpush.msra.mxu0 0.0
      %1380 = vmatpush.msra.mxu0 0.0
      %1381 = vmatpush.msra.mxu0 0.0
      %1382 = vmatpush.msra.mxu0 0.0
      %1383 = vmatpush.msra.mxu0 0.0
      %1384 = vmatpush.msra.mxu0 0.0
      %1385 = vmatpush.msra.mxu0 0.0
      %1386 = vmatpush.msra.mxu0 0.0
      %1387 = vmatpush.msra.mxu0 0.0
      %1388 = vmatpush.msra.mxu0 0.0
      %1389 = vmatpush.msra.mxu0 0.0
      %1390 = vmatpush.msra.mxu0 0.0
      %1391 = vmatpush.msra.mxu0 %v1370
      %1392 = vmatmul.f32.gmra.mxu0 %v1368
      %v1393 = vpop.f32.mrf.mxu0
      %v1394 = vadd.f32 0.0, %v1393
      %1395 = vdwg.mxu0
      %1396 = vmatpush.msra.mxu0 0.0
      %1397 = vmatpush.msra.mxu0 0.0
      %1398 = vmatpush.msra.mxu0 0.0
      %1399 = vmatpush.msra.mxu0 0.0
      %1400 = vmatpush.msra.mxu0 0.0
      %1401 = vmatpush.msra.mxu0 0.0
      %1402 = vmatpush.msra.mxu0 0.0
      %1403 = vmatpush.msra.mxu0 0.0
      %1404 = vmatpush.msra.mxu0 0.0
      %1405 = vmatpush.msra.mxu0 0.0
      %1406 = vmatpush.msra.mxu0 0.0
      %1407 = vmatpush.msra.mxu0 0.0
      %1408 = vmatpush.msra.mxu0 0.0
      %1409 = vmatpush.msra.mxu0 0.0
      %1410 = vmatpush.msra.mxu0 0.0
      %1411 = vmatpush.msra.mxu0 %v1372
      %1412 = vmatmul.f32.gmra.mxu0 %v1368
      %v1413 = vpop.f32.mrf.mxu0
      %v1414 = vadd.f32 0.0, %v1413
      %1415 = vdwg.mxu0
      %1416 = vmatpush.msra.mxu0 0.0
      %1417 = vmatpush.msra.mxu0 0.0
      %1418 = vmatpush.msra.mxu0 0.0
      %1419 = vmatpush.msra.mxu0 0.0
      %1420 = vmatpush.msra.mxu0 0.0
      %1421 = vmatpush.msra.mxu0 0.0
      %1422 = vmatpush.msra.mxu0 0.0
      %1423 = vmatpush.msra.mxu0 0.0
      %1424 = vmatpush.msra.mxu0 0.0
      %1425 = vmatpush.msra.mxu0 0.0
      %1426 = vmatpush.msra.mxu0 0.0
      %1427 = vmatpush.msra.mxu0 0.0
      %1428 = vmatpush.msra.mxu0 0.0
      %1429 = vmatpush.msra.mxu0 0.0
      %1430 = vmatpush.msra.mxu0 0.0
      %1431 = vmatpush.msra.mxu0 %v1374
      %1432 = vmatmul.f32.gmra.mxu0 %v1368
      %v1433 = vpop.f32.mrf.mxu0
      %v1434 = vadd.f32 0.0, %v1433
      %1435 = vdwg.mxu0
      %v1436 = vadd.f32 %v1300, %v1394
      %v1437 = vadd.f32 %v1320, %v1414
      %v1438 = vadd.f32 %v1340, %v1434
      %s1439 = scalar_lea.vmem %s3, 24
      %v1440 = vld [vmem:[%s1439] sm:$0xff]
      %v1441 = vld [vmem:[#allocation3] sm:$0xff]
      %v1442 = vld [vmem:[#allocation3 + $0x8] sm:$0xff]
      %1445 = vst [vmem:[#allocation1] ss:$2 sm:$0xff] %v1441
      %s1446 = scalar_lea.vmem [#allocation1], 16
      %1447 = vst [vmem:[%s1446] ss:$2 sm:$0xff] %v1442
      %v1448 = vld.sshfl [vmem:[#allocation1] sm:$0xff pattern:$0x75316420]
      %v1449 = vld.sshfl [vmem:[#allocation1 + $0x8] sm:$0xff pattern:$0x75316420]
      %v1450 = vld.sshfl [vmem:[#allocation1 + $0x10] sm:$0xff pattern:$0x75316420]
      %v1451 = vld.sshfl [vmem:[#allocation1 + $0x18] sm:$0xff pattern:$0x75316420]
      %1452 = vrot.lane.b32.xlu0 %v1448, 1
      %v1453 = vpop.permute.xlu0 %1452
      %1454 = vrot.lane.b32.xlu0 %v1449, 1
      %v1455 = vpop.permute.xlu0 %1454
      %1456 = vrot.lane.b32.xlu0 %v1450, 1
      %v1457 = vpop.permute.xlu0 %1456
      %1458 = vrot.lane.b32.xlu0 %v1451, 1
      %v1459 = vpop.permute.xlu0 %1458
      %vm1460 = vcmask 7168
      %v1461 = vsel %vm1460, %v1453, %v1455
      %v1462 = vsel %vm1460, %v1455, %v1457
      %v1463 = vsel %vm1460, %v1457, %v1459
      %v1465 = vsel %vm1184, %v1440, 0
      %v1467 = vsel %vm1153, %v1461, 0
      %v1469 = vsel %vm1153, %v1462, 0
      %v1471 = vsel %vm1153, %v1463, 0
      %1473 = vmatpush.msra.mxu0 0.0
      %1474 = vmatpush.msra.mxu0 0.0
      %1475 = vmatpush.msra.mxu0 0.0
      %1476 = vmatpush.msra.mxu0 0.0
      %1477 = vmatpush.msra.mxu0 0.0
      %1478 = vmatpush.msra.mxu0 0.0
      %1479 = vmatpush.msra.mxu0 0.0
      %1480 = vmatpush.msra.mxu0 0.0
      %1481 = vmatpush.msra.mxu0 0.0
      %1482 = vmatpush.msra.mxu0 0.0
      %1483 = vmatpush.msra.mxu0 0.0
      %1484 = vmatpush.msra.mxu0 0.0
      %1485 = vmatpush.msra.mxu0 0.0
      %1486 = vmatpush.msra.mxu0 0.0
      %1487 = vmatpush.msra.mxu0 0.0
      %1488 = vmatpush.msra.mxu0 %v1467
      %1489 = vmatmul.f32.gmra.mxu0 %v1465
      %v1490 = vpop.f32.mrf.mxu0
      %v1491 = vadd.f32 0.0, %v1490
      %1492 = vdwg.mxu0
      %1493 = vmatpush.msra.mxu0 0.0
      %1494 = vmatpush.msra.mxu0 0.0
      %1495 = vmatpush.msra.mxu0 0.0
      %1496 = vmatpush.msra.mxu0 0.0
      %1497 = vmatpush.msra.mxu0 0.0
      %1498 = vmatpush.msra.mxu0 0.0
      %1499 = vmatpush.msra.mxu0 0.0
      %1500 = vmatpush.msra.mxu0 0.0
      %1501 = vmatpush.msra.mxu0 0.0
      %1502 = vmatpush.msra.mxu0 0.0
      %1503 = vmatpush.msra.mxu0 0.0
      %1504 = vmatpush.msra.mxu0 0.0
      %1505 = vmatpush.msra.mxu0 0.0
      %1506 = vmatpush.msra.mxu0 0.0
      %1507 = vmatpush.msra.mxu0 0.0
      %1508 = vmatpush.msra.mxu0 %v1469
      %1509 = vmatmul.f32.gmra.mxu0 %v1465
      %v1510 = vpop.f32.mrf.mxu0
      %v1511 = vadd.f32 0.0, %v1510
      %1512 = vdwg.mxu0
      %1513 = vmatpush.msra.mxu0 0.0
      %1514 = vmatpush.msra.mxu0 0.0
      %1515 = vmatpush.msra.mxu0 0.0
      %1516 = vmatpush.msra.mxu0 0.0
      %1517 = vmatpush.msra.mxu0 0.0
      %1518 = vmatpush.msra.mxu0 0.0
      %1519 = vmatpush.msra.mxu0 0.0
      %1520 = vmatpush.msra.mxu0 0.0
      %1521 = vmatpush.msra.mxu0 0.0
      %1522 = vmatpush.msra.mxu0 0.0
      %1523 = vmatpush.msra.mxu0 0.0
      %1524 = vmatpush.msra.mxu0 0.0
      %1525 = vmatpush.msra.mxu0 0.0
      %1526 = vmatpush.msra.mxu0 0.0
      %1527 = vmatpush.msra.mxu0 0.0
      %1528 = vmatpush.msra.mxu0 %v1471
      %1529 = vmatmul.f32.gmra.mxu0 %v1465
      %v1530 = vpop.f32.mrf.mxu0
      %v1531 = vadd.f32 0.0, %v1530
      %1532 = vdwg.mxu0
      %v1533 = vadd.f32 %v1436, %v1491
      %v1534 = vadd.f32 %v1437, %v1511
      %v1535 = vadd.f32 %v1438, %v1531
      %s1536 = scalar_lea.vmem %s3, 32
      %v1537 = vld [vmem:[%s1536] sm:$0xff]
      %v1538 = vld [vmem:[#allocation3 + $0x4] sm:$0xff]
      %v1539 = vld [vmem:[#allocation3 + $0xc] sm:$0xf]
      %1542 = vst [vmem:[#allocation1] ss:$2 sm:$0xff] %v1538
      %s1543 = scalar_lea.vmem [#allocation1], 16
      %1544 = vst [vmem:[%s1543] ss:$2 sm:$0xff] %v1539
      %v1545 = vld.sshfl [vmem:[#allocation1] sm:$0xff pattern:$0x75316420]
      %v1546 = vld.sshfl [vmem:[#allocation1 + $0x8] sm:$0xff pattern:$0x75316420]
      %v1547 = vld.sshfl [vmem:[#allocation1 + $0x10] sm:$0xff pattern:$0x75316420]
      %v1549 = vsel %vm1184, %v1537, 0
      %v1551 = vsel %vm1153, %v1545, 0
      %v1553 = vsel %vm1153, %v1546, 0
      %v1555 = vsel %vm1153, %v1547, 0
      %1557 = vmatpush.msra.mxu0 0.0
      %1558 = vmatpush.msra.mxu0 0.0
      %1559 = vmatpush.msra.mxu0 0.0
      %1560 = vmatpush.msra.mxu0 0.0
      %1561 = vmatpush.msra.mxu0 0.0
      %1562 = vmatpush.msra.mxu0 0.0
      %1563 = vmatpush.msra.mxu0 0.0
      %1564 = vmatpush.msra.mxu0 0.0
      %1565 = vmatpush.msra.mxu0 0.0
      %1566 = vmatpush.msra.mxu0 0.0
      %1567 = vmatpush.msra.mxu0 0.0
      %1568 = vmatpush.msra.mxu0 0.0
      %1569 = vmatpush.msra.mxu0 0.0
      %1570 = vmatpush.msra.mxu0 0.0
      %1571 = vmatpush.msra.mxu0 0.0
      %1572 = vmatpush.msra.mxu0 %v1551
      %1573 = vmatmul.f32.gmra.mxu0 %v1549
      %v1574 = vpop.f32.mrf.mxu0
      %v1575 = vadd.f32 0.0, %v1574
      %1576 = vdwg.mxu0
      %1577 = vmatpush.msra.mxu0 0.0
      %1578 = vmatpush.msra.mxu0 0.0
      %1579 = vmatpush.msra.mxu0 0.0
      %1580 = vmatpush.msra.mxu0 0.0
      %1581 = vmatpush.msra.mxu0 0.0
      %1582 = vmatpush.msra.mxu0 0.0
      %1583 = vmatpush.msra.mxu0 0.0
      %1584 = vmatpush.msra.mxu0 0.0
      %1585 = vmatpush.msra.mxu0 0.0
      %1586 = vmatpush.msra.mxu0 0.0
      %1587 = vmatpush.msra.mxu0 0.0
      %1588 = vmatpush.msra.mxu0 0.0
      %1589 = vmatpush.msra.mxu0 0.0
      %1590 = vmatpush.msra.mxu0 0.0
      %1591 = vmatpush.msra.mxu0 0.0
      %1592 = vmatpush.msra.mxu0 %v1553
      %1593 = vmatmul.f32.gmra.mxu0 %v1549
      %v1594 = vpop.f32.mrf.mxu0
      %v1595 = vadd.f32 0.0, %v1594
      %1596 = vdwg.mxu0
      %1597 = vmatpush.msra.mxu0 0.0
      %1598 = vmatpush.msra.mxu0 0.0
      %1599 = vmatpush.msra.mxu0 0.0
      %1600 = vmatpush.msra.mxu0 0.0
      %1601 = vmatpush.msra.mxu0 0.0
      %1602 = vmatpush.msra.mxu0 0.0
      %1603 = vmatpush.msra.mxu0 0.0
      %1604 = vmatpush.msra.mxu0 0.0
      %1605 = vmatpush.msra.mxu0 0.0
      %1606 = vmatpush.msra.mxu0 0.0
      %1607 = vmatpush.msra.mxu0 0.0
      %1608 = vmatpush.msra.mxu0 0.0
      %1609 = vmatpush.msra.mxu0 0.0
      %1610 = vmatpush.msra.mxu0 0.0
      %1611 = vmatpush.msra.mxu0 0.0
      %1612 = vmatpush.msra.mxu0 %v1555
      %1613 = vmatmul.f32.gmra.mxu0 %v1549
      %v1614 = vpop.f32.mrf.mxu0
      %v1615 = vadd.f32 0.0, %v1614
      %1616 = vdwg.mxu0
      %v1617 = vadd.f32 %v1533, %v1575
      %v1618 = vadd.f32 %v1534, %v1595
      %v1619 = vadd.f32 %v1535, %v1615
      %s1620 = scalar_lea.vmem %s3, 40
      %v1621 = vld [vmem:[%s1620] sm:$0xff]
      %v1622 = vld [vmem:[#allocation3 + $0x4] sm:$0xff]
      %v1623 = vld [vmem:[#allocation3 + $0xc] sm:$0xff]
      %1626 = vst [vmem:[#allocation1] ss:$2 sm:$0xff] %v1622
      %s1627 = scalar_lea.vmem [#allocation1], 16
      %1628 = vst [vmem:[%s1627] ss:$2 sm:$0xff] %v1623
      %v1629 = vld.sshfl [vmem:[#allocation1] sm:$0xff pattern:$0x75316420]
      %v1630 = vld.sshfl [vmem:[#allocation1 + $0x8] sm:$0xff pattern:$0x75316420]
      %v1631 = vld.sshfl [vmem:[#allocation1 + $0x10] sm:$0xff pattern:$0x75316420]
      %v1632 = vld.sshfl [vmem:[#allocation1 + $0x18] sm:$0xff pattern:$0x75316420]
      %1633 = vrot.lane.b32.xlu0 %v1629, 127
      %v1634 = vpop.permute.xlu0 %1633
      %1635 = vrot.lane.b32.xlu0 %v1630, 127
      %v1636 = vpop.permute.xlu0 %1635
      %1637 = vrot.lane.b32.xlu0 %v1631, 127
      %v1638 = vpop.permute.xlu0 %1637
      %1639 = vrot.lane.b32.xlu0 %v1632, 127
      %v1640 = vpop.permute.xlu0 %1639
      %v1641 = vsel %vm394, %v1634, %v1636
      %v1642 = vsel %vm394, %v1636, %v1638
      %v1643 = vsel %vm394, %v1638, %v1640
      %v1645 = vsel %vm1184, %v1621, 0
      %v1647 = vsel %vm1153, %v1641, 0
      %v1649 = vsel %vm1153, %v1642, 0
      %v1651 = vsel %vm1153, %v1643, 0
      %1653 = vmatpush.msra.mxu0 0.0
      %1654 = vmatpush.msra.mxu0 0.0
      %1655 = vmatpush.msra.mxu0 0.0
      %1656 = vmatpush.msra.mxu0 0.0
      %1657 = vmatpush.msra.mxu0 0.0
      %1658 = vmatpush.msra.mxu0 0.0
      %1659 = vmatpush.msra.mxu0 0.0
      %1660 = vmatpush.msra.mxu0 0.0
      %1661 = vmatpush.msra.mxu0 0.0
      %1662 = vmatpush.msra.mxu0 0.0
      %1663 = vmatpush.msra.mxu0 0.0
      %1664 = vmatpush.msra.mxu0 0.0
      %1665 = vmatpush.msra.mxu0 0.0
      %1666 = vmatpush.msra.mxu0 0.0
      %1667 = vmatpush.msra.mxu0 0.0
      %1668 = vmatpush.msra.mxu0 %v1647
      %1669 = vmatmul.f32.gmra.mxu0 %v1645
      %v1670 = vpop.f32.mrf.mxu0
      %v1671 = vadd.f32 0.0, %v1670
      %1672 = vdwg.mxu0
      %1673 = vmatpush.msra.mxu0 0.0
      %1674 = vmatpush.msra.mxu0 0.0
      %1675 = vmatpush.msra.mxu0 0.0
      %1676 = vmatpush.msra.mxu0 0.0
      %1677 = vmatpush.msra.mxu0 0.0
      %1678 = vmatpush.msra.mxu0 0.0
      %1679 = vmatpush.msra.mxu0 0.0
      %1680 = vmatpush.msra.mxu0 0.0
      %1681 = vmatpush.msra.mxu0 0.0
      %1682 = vmatpush.msra.mxu0 0.0
      %1683 = vmatpush.msra.mxu0 0.0
      %1684 = vmatpush.msra.mxu0 0.0
      %1685 = vmatpush.msra.mxu0 0.0
      %1686 = vmatpush.msra.mxu0 0.0
      %1687 = vmatpush.msra.mxu0 0.0
      %1688 = vmatpush.msra.mxu0 %v1649
      %1689 = vmatmul.f32.gmra.mxu0 %v1645
      %v1690 = vpop.f32.mrf.mxu0
      %v1691 = vadd.f32 0.0, %v1690
      %1692 = vdwg.mxu0
      %1693 = vmatpush.msra.mxu0 0.0
      %1694 = vmatpush.msra.mxu0 0.0
      %1695 = vmatpush.msra.mxu0 0.0
      %1696 = vmatpush.msra.mxu0 0.0
      %1697 = vmatpush.msra.mxu0 0.0
      %1698 = vmatpush.msra.mxu0 0.0
      %1699 = vmatpush.msra.mxu0 0.0
      %1700 = vmatpush.msra.mxu0 0.0
      %1701 = vmatpush.msra.mxu0 0.0
      %1702 = vmatpush.msra.mxu0 0.0
      %1703 = vmatpush.msra.mxu0 0.0
      %1704 = vmatpush.msra.mxu0 0.0
      %1705 = vmatpush.msra.mxu0 0.0
      %1706 = vmatpush.msra.mxu0 0.0
      %1707 = vmatpush.msra.mxu0 0.0
      %1708 = vmatpush.msra.mxu0 %v1651
      %1709 = vmatmul.f32.gmra.mxu0 %v1645
      %v1710 = vpop.f32.mrf.mxu0
      %v1711 = vadd.f32 0.0, %v1710
      %1712 = vdwg.mxu0
      %v1713 = vadd.f32 %v1617, %v1671
      %v1714 = vadd.f32 %v1618, %v1691
      %v1715 = vadd.f32 %v1619, %v1711
      %s1716 = scalar_lea.vmem %s3, 48
      %v1717 = vld [vmem:[%s1716] sm:$0xff]
      %v1718 = vld [vmem:[#allocation3 + $0x4] sm:$0xff]
      %v1719 = vld [vmem:[#allocation3 + $0xc] sm:$0xff]
      %1722 = vst [vmem:[#allocation1] ss:$2 sm:$0xff] %v1718
      %s1723 = scalar_lea.vmem [#allocation1], 16
      %1724 = vst [vmem:[%s1723] ss:$2 sm:$0xff] %v1719
      %v1725 = vld.sshfl [vmem:[#allocation1] sm:$0xff pattern:$0x75316420]
      %v1726 = vld.sshfl [vmem:[#allocation1 + $0x8] sm:$0xff pattern:$0x75316420]
      %v1727 = vld.sshfl [vmem:[#allocation1 + $0x10] sm:$0xff pattern:$0x75316420]
      %v1728 = vld.sshfl [vmem:[#allocation1 + $0x18] sm:$0xff pattern:$0x75316420]
      %1729 = vrot.lane.b32.xlu0 %v1725, 111
      %v1730 = vpop.permute.xlu0 %1729
      %1731 = vrot.lane.b32.xlu0 %v1726, 111
      %v1732 = vpop.permute.xlu0 %1731
      %1733 = vrot.lane.b32.xlu0 %v1727, 111
      %v1734 = vpop.permute.xlu0 %1733
      %1735 = vrot.lane.b32.xlu0 %v1728, 111
      %v1736 = vpop.permute.xlu0 %1735
      %vm1737 = vcmask 908288
      %v1738 = vsel %vm1737, %v1730, %v1732
      %v1739 = vsel %vm1737, %v1732, %v1734
      %v1740 = vsel %vm1737, %v1734, %v1736
      %v1742 = vsel %vm1184, %v1717, 0
      %v1744 = vsel %vm1153, %v1738, 0
      %v1746 = vsel %vm1153, %v1739, 0
      %v1748 = vsel %vm1153, %v1740, 0
      %1750 = vmatpush.msra.mxu0 0.0
      %1751 = vmatpush.msra.mxu0 0.0
      %1752 = vmatpush.msra.mxu0 0.0
      %1753 = vmatpush.msra.mxu0 0.0
      %1754 = vmatpush.msra.mxu0 0.0
      %1755 = vmatpush.msra.mxu0 0.0
      %1756 = vmatpush.msra.mxu0 0.0
      %1757 = vmatpush.msra.mxu0 0.0
      %1758 = vmatpush.msra.mxu0 0.0
      %1759 = vmatpush.msra.mxu0 0.0
      %1760 = vmatpush.msra.mxu0 0.0
      %1761 = vmatpush.msra.mxu0 0.0
      %1762 = vmatpush.msra.mxu0 0.0
      %1763 = vmatpush.msra.mxu0 0.0
      %1764 = vmatpush.msra.mxu0 0.0
      %1765 = vmatpush.msra.mxu0 %v1744
      %1766 = vmatmul.f32.gmra.mxu0 %v1742
      %v1767 = vpop.f32.mrf.mxu0
      %v1768 = vadd.f32 0.0, %v1767
      %1769 = vdwg.mxu0
      %1770 = vmatpush.msra.mxu0 0.0
      %1771 = vmatpush.msra.mxu0 0.0
      %1772 = vmatpush.msra.mxu0 0.0
      %1773 = vmatpush.msra.mxu0 0.0
      %1774 = vmatpush.msra.mxu0 0.0
      %1775 = vmatpush.msra.mxu0 0.0
      %1776 = vmatpush.msra.mxu0 0.0
      %1777 = vmatpush.msra.mxu0 0.0
      %1778 = vmatpush.msra.mxu0 0.0
      %1779 = vmatpush.msra.mxu0 0.0
      %1780 = vmatpush.msra.mxu0 0.0
      %1781 = vmatpush.msra.mxu0 0.0
      %1782 = vmatpush.msra.mxu0 0.0
      %1783 = vmatpush.msra.mxu0 0.0
      %1784 = vmatpush.msra.mxu0 0.0
      %1785 = vmatpush.msra.mxu0 %v1746
      %1786 = vmatmul.f32.gmra.mxu0 %v1742
      %v1787 = vpop.f32.mrf.mxu0
      %v1788 = vadd.f32 0.0, %v1787
      %1789 = vdwg.mxu0
      %1790 = vmatpush.msra.mxu0 0.0
      %1791 = vmatpush.msra.mxu0 0.0
      %1792 = vmatpush.msra.mxu0 0.0
      %1793 = vmatpush.msra.mxu0 0.0
      %1794 = vmatpush.msra.mxu0 0.0
      %1795 = vmatpush.msra.mxu0 0.0
      %1796 = vmatpush.msra.mxu0 0.0
      %1797 = vmatpush.msra.mxu0 0.0
      %1798 = vmatpush.msra.mxu0 0.0
      %1799 = vmatpush.msra.mxu0 0.0
      %1800 = vmatpush.msra.mxu0 0.0
      %1801 = vmatpush.msra.mxu0 0.0
      %1802 = vmatpush.msra.mxu0 0.0
      %1803 = vmatpush.msra.mxu0 0.0
      %1804 = vmatpush.msra.mxu0 0.0
      %1805 = vmatpush.msra.mxu0 %v1748
      %1806 = vmatmul.f32.gmra.mxu0 %v1742
      %v1807 = vpop.f32.mrf.mxu0
      %v1808 = vadd.f32 0.0, %v1807
      %1809 = vdwg.mxu0
      %v1810 = vadd.f32 %v1713, %v1768
      %v1811 = vadd.f32 %v1714, %v1788
      %v1812 = vadd.f32 %v1715, %v1808
      %s1813 = scalar_lea.vmem %s3, 56
      %v1814 = vld [vmem:[%s1813] sm:$0xff]
      %v1815 = vld [vmem:[#allocation3 + $0x4] sm:$0xff]
      %v1816 = vld [vmem:[#allocation3 + $0xc] sm:$0xff]
      %1819 = vst [vmem:[#allocation1] ss:$2 sm:$0xff] %v1815
      %s1820 = scalar_lea.vmem [#allocation1], 16
      %1821 = vst [vmem:[%s1820] ss:$2 sm:$0xff] %v1816
      %v1822 = vld.sshfl [vmem:[#allocation1] sm:$0xff pattern:$0x75316420]
      %v1823 = vld.sshfl [vmem:[#allocation1 + $0x8] sm:$0xff pattern:$0x75316420]
      %v1824 = vld.sshfl [vmem:[#allocation1 + $0x10] sm:$0xff pattern:$0x75316420]
      %v1825 = vld.sshfl [vmem:[#allocation1 + $0x18] sm:$0xff pattern:$0x75316420]
      %1826 = vrot.lane.b32.xlu0 %v1822, 110
      %v1827 = vpop.permute.xlu0 %1826
      %1828 = vrot.lane.b32.xlu0 %v1823, 110
      %v1829 = vpop.permute.xlu0 %1828
      %1830 = vrot.lane.b32.xlu0 %v1824, 110
      %v1831 = vpop.permute.xlu0 %1830
      %1832 = vrot.lane.b32.xlu0 %v1825, 110
      %v1833 = vpop.permute.xlu0 %1832
      %v1834 = vsel %vm621, %v1827, %v1829
      %v1835 = vsel %vm621, %v1829, %v1831
      %v1836 = vsel %vm621, %v1831, %v1833
      %v1838 = vsel %vm1184, %v1814, 0
      %v1840 = vsel %vm1153, %v1834, 0
      %v1842 = vsel %vm1153, %v1835, 0
      %v1844 = vsel %vm1153, %v1836, 0
      %1846 = vmatpush.msra.mxu0 0.0
      %1847 = vmatpush.msra.mxu0 0.0
      %1848 = vmatpush.msra.mxu0 0.0
      %1849 = vmatpush.msra.mxu0 0.0
      %1850 = vmatpush.msra.mxu0 0.0
      %1851 = vmatpush.msra.mxu0 0.0
      %1852 = vmatpush.msra.mxu0 0.0
      %1853 = vmatpush.msra.mxu0 0.0
      %1854 = vmatpush.msra.mxu0 0.0
      %1855 = vmatpush.msra.mxu0 0.0
      %1856 = vmatpush.msra.mxu0 0.0
      %1857 = vmatpush.msra.mxu0 0.0
      %1858 = vmatpush.msra.mxu0 0.0
      %1859 = vmatpush.msra.mxu0 0.0
      %1860 = vmatpush.msra.mxu0 0.0
      %1861 = vmatpush.msra.mxu0 %v1840
      %1862 = vmatmul.f32.gmra.mxu0 %v1838
      %v1863 = vpop.f32.mrf.mxu0
      %v1864 = vadd.f32 0.0, %v1863
      %1865 = vdwg.mxu0
      %1866 = vmatpush.msra.mxu0 0.0
      %1867 = vmatpush.msra.mxu0 0.0
      %1868 = vmatpush.msra.mxu0 0.0
      %1869 = vmatpush.msra.mxu0 0.0
      %1870 = vmatpush.msra.mxu0 0.0
      %1871 = vmatpush.msra.mxu0 0.0
      %1872 = vmatpush.msra.mxu0 0.0
      %1873 = vmatpush.msra.mxu0 0.0
      %1874 = vmatpush.msra.mxu0 0.0
      %1875 = vmatpush.msra.mxu0 0.0
      %1876 = vmatpush.msra.mxu0 0.0
      %1877 = vmatpush.msra.mxu0 0.0
      %1878 = vmatpush.msra.mxu0 0.0
      %1879 = vmatpush.msra.mxu0 0.0
      %1880 = vmatpush.msra.mxu0 0.0
      %1881 = vmatpush.msra.mxu0 %v1842
      %1882 = vmatmul.f32.gmra.mxu0 %v1838
      %v1883 = vpop.f32.mrf.mxu0
      %v1884 = vadd.f32 0.0, %v1883
      %1885 = vdwg.mxu0
      %1886 = vmatpush.msra.mxu0 0.0
      %1887 = vmatpush.msra.mxu0 0.0
      %1888 = vmatpush.msra.mxu0 0.0
      %1889 = vmatpush.msra.mxu0 0.0
      %1890 = vmatpush.msra.mxu0 0.0
      %1891 = vmatpush.msra.mxu0 0.0
      %1892 = vmatpush.msra.mxu0 0.0
      %1893 = vmatpush.msra.mxu0 0.0
      %1894 = vmatpush.msra.mxu0 0.0
      %1895 = vmatpush.msra.mxu0 0.0
      %1896 = vmatpush.msra.mxu0 0.0
      %1897 = vmatpush.msra.mxu0 0.0
      %1898 = vmatpush.msra.mxu0 0.0
      %1899 = vmatpush.msra.mxu0 0.0
      %1900 = vmatpush.msra.mxu0 0.0
      %1901 = vmatpush.msra.mxu0 %v1844
      %1902 = vmatmul.f32.gmra.mxu0 %v1838
      %v1903 = vpop.f32.mrf.mxu0
      %v1904 = vadd.f32 0.0, %v1903
      %1905 = vdwg.mxu0
      %v1906 = vadd.f32 %v1810, %v1864
      %v1907 = vadd.f32 %v1811, %v1884
      %v1908 = vadd.f32 %v1812, %v1904
      %s1909 = scalar_lea.vmem %s3, 64
      %v1910 = vld [vmem:[%s1909] sm:$0xff]
      %v1911 = vld [vmem:[#allocation3 + $0x4] sm:$0xff]
      %v1912 = vld [vmem:[#allocation3 + $0xc] sm:$0xff]
      %1915 = vst [vmem:[#allocation1] ss:$2 sm:$0xff] %v1911
      %s1916 = scalar_lea.vmem [#allocation1], 16
      %1917 = vst [vmem:[%s1916] ss:$2 sm:$0xff] %v1912
      %v1918 = vld.sshfl [vmem:[#allocation1] sm:$0xff pattern:$0x75316420]
      %v1919 = vld.sshfl [vmem:[#allocation1 + $0x8] sm:$0xff pattern:$0x75316420]
      %v1920 = vld.sshfl [vmem:[#allocation1 + $0x10] sm:$0xff pattern:$0x75316420]
      %v1921 = vld.sshfl [vmem:[#allocation1 + $0x18] sm:$0xff pattern:$0x75316420]
      %1922 = vrot.lane.b32.xlu0 %v1918, 109
      %v1923 = vpop.permute.xlu0 %1922
      %1924 = vrot.lane.b32.xlu0 %v1919, 109
      %v1925 = vpop.permute.xlu0 %1924
      %1926 = vrot.lane.b32.xlu0 %v1920, 109
      %v1927 = vpop.permute.xlu0 %1926
      %1928 = vrot.lane.b32.xlu0 %v1921, 109
      %v1929 = vpop.permute.xlu0 %1928
      %v1930 = vsel %vm704, %v1923, %v1925
      %v1931 = vsel %vm704, %v1925, %v1927
      %v1932 = vsel %vm704, %v1927, %v1929
      %v1934 = vsel %vm1184, %v1910, 0
      %v1936 = vsel %vm1153, %v1930, 0
      %v1938 = vsel %vm1153, %v1931, 0
      %v1940 = vsel %vm1153, %v1932, 0
      %1942 = vmatpush.msra.mxu0 0.0
      %1943 = vmatpush.msra.mxu0 0.0
      %1944 = vmatpush.msra.mxu0 0.0
      %1945 = vmatpush.msra.mxu0 0.0
      %1946 = vmatpush.msra.mxu0 0.0
      %1947 = vmatpush.msra.mxu0 0.0
      %1948 = vmatpush.msra.mxu0 0.0
      %1949 = vmatpush.msra.mxu0 0.0
      %1950 = vmatpush.msra.mxu0 0.0
      %1951 = vmatpush.msra.mxu0 0.0
      %1952 = vmatpush.msra.mxu0 0.0
      %1953 = vmatpush.msra.mxu0 0.0
      %1954 = vmatpush.msra.mxu0 0.0
      %1955 = vmatpush.msra.mxu0 0.0
      %1956 = vmatpush.msra.mxu0 0.0
      %1957 = vmatpush.msra.mxu0 %v1936
      %1958 = vmatmul.f32.gmra.mxu0 %v1934
      %v1959 = vpop.f32.mrf.mxu0
      %v1960 = vadd.f32 0.0, %v1959
      %1961 = vdwg.mxu0
      %1962 = vmatpush.msra.mxu0 0.0
      %1963 = vmatpush.msra.mxu0 0.0
      %1964 = vmatpush.msra.mxu0 0.0
      %1965 = vmatpush.msra.mxu0 0.0
      %1966 = vmatpush.msra.mxu0 0.0
      %1967 = vmatpush.msra.mxu0 0.0
      %1968 = vmatpush.msra.mxu0 0.0
      %1969 = vmatpush.msra.mxu0 0.0
      %1970 = vmatpush.msra.mxu0 0.0
      %1971 = vmatpush.msra.mxu0 0.0
      %1972 = vmatpush.msra.mxu0 0.0
      %1973 = vmatpush.msra.mxu0 0.0
      %1974 = vmatpush.msra.mxu0 0.0
      %1975 = vmatpush.msra.mxu0 0.0
      %1976 = vmatpush.msra.mxu0 0.0
      %1977 = vmatpush.msra.mxu0 %v1938
      %1978 = vmatmul.f32.gmra.mxu0 %v1934
      %v1979 = vpop.f32.mrf.mxu0
      %v1980 = vadd.f32 0.0, %v1979
      %1981 = vdwg.mxu0
      %1982 = vmatpush.msra.mxu0 0.0
      %1983 = vmatpush.msra.mxu0 0.0
      %1984 = vmatpush.msra.mxu0 0.0
      %1985 = vmatpush.msra.mxu0 0.0
      %1986 = vmatpush.msra.mxu0 0.0
      %1987 = vmatpush.msra.mxu0 0.0
      %1988 = vmatpush.msra.mxu0 0.0
      %1989 = vmatpush.msra.mxu0 0.0
      %1990 = vmatpush.msra.mxu0 0.0
      %1991 = vmatpush.msra.mxu0 0.0
      %1992 = vmatpush.msra.mxu0 0.0
      %1993 = vmatpush.msra.mxu0 0.0
      %1994 = vmatpush.msra.mxu0 0.0
      %1995 = vmatpush.msra.mxu0 0.0
      %1996 = vmatpush.msra.mxu0 0.0
      %1997 = vmatpush.msra.mxu0 %v1940
      %1998 = vmatmul.f32.gmra.mxu0 %v1934
      %v1999 = vpop.f32.mrf.mxu0
      %v2000 = vadd.f32 0.0, %v1999
      %2001 = vdwg.mxu0
      %v2002 = vadd.f32 %v1906, %v1960
      %v2003 = vadd.f32 %v1907, %v1980
      %v2004 = vadd.f32 %v1908, %v2000
      %v2005 = vld [vmem:[%s4] sm:$0xff]
      %2007 = vset.pattern.permute.xlu0 0
      %2008 = vperm.xlu0 %2007, %v2005
      %v2009 = vpop.permute.xlu0 %2008
      %v2011 = vadd.f32 %v2002, %v2009
      %v2012 = vadd.f32 %v2003, %v2009
      %v2013 = vadd.f32 %v2004, %v2009
      %v2014 = vsub.f32 0.0, %v2011
      %v2015 = vsub.f32 0.0, %v2012
      %v2016 = vsub.f32 0.0, %v2013
      %v2017 = vmul.f32 %v2014, 1.442695
      %v2018 = vpow.pop %v2017
      %v2019 = vmul.f32 %v2015, 1.442695
      %v2020 = vpow.pop %v2019
      %v2021 = vmul.f32 %v2016, 1.442695
      %v2022 = vpow.pop %v2021
      %v2023 = vadd.f32 %v2018, 1.0
      %v2024 = vadd.f32 %v2020, 1.0
      %v2025 = vadd.f32 %v2022, 1.0
      %v2026 = vrcp.pop %v2023
      %v2027 = vrcp.pop %v2024
      %v2028 = vrcp.pop %v2025
      %v2029 = vmul.f32 %v2011, %v2026
      %v2030 = vmul.f32 %v2012, %v2027
      %v2031 = vmul.f32 %v2013, %v2028
      %v2032 = vld [vmem:[#allocation2] sm:$0xff]
      %v2033 = vld [vmem:[#allocation2 + $0x8] sm:$0xff]
      %v2034 = vld [vmem:[#allocation2 + $0x10] sm:$0xff]
      %v2035 = vld [vmem:[#allocation2 + $0x18] sm:$0xff]
      %2040 = vrot.lane.b32.xlu0 %v2032, 109
      %v2041 = vpop.permute.xlu0 %2040
      %2042 = vrot.lane.b32.xlu0 %v2033, 109
      %v2043 = vpop.permute.xlu0 %2042
      %2044 = vrot.lane.b32.xlu0 %v2034, 109
      %v2045 = vpop.permute.xlu0 %2044
      %2046 = vrot.lane.b32.xlu0 %v2035, 109
      %v2047 = vpop.permute.xlu0 %2046
      %v2048 = vsel %vm704, %v2041, %v2043
      %v2049 = vsel %vm704, %v2043, %v2045
      %v2050 = vsel %vm704, %v2045, %v2047
      %v2054 = vadd.f32 %v2029, %v2048
      %v2055 = vadd.f32 %v2030, %v2049
      %v2056 = vadd.f32 %v2031, %v2050
      %vm2057 = vcmask 130048
      %2058 = vst.msk [vmem:[%s251] sm:$0xff] %vm2057, %v2054
      %2060 = vrot.lane.b32.xlu0 %v2054, 126
      %v2061 = vpop.permute.xlu0 %2060
      %vm2063 = vcmask 261248
      %2064 = vst.msk [vmem:[%s251] sm:$0xff] %vm2063, %v2061
      %2065 = vrot.lane.b32.xlu0 %v2054, 124
      %v2066 = vpop.permute.xlu0 %2065
      %vm2068 = vcmask 392448
      %2069 = vst.msk [vmem:[%s251] sm:$0xff] %vm2068, %v2066
      %2070 = vrot.lane.b32.xlu0 %v2054, 122
      %v2071 = vpop.permute.xlu0 %2070
      %vm2073 = vcmask 523648
      %2074 = vst.msk [vmem:[%s251] sm:$0xff] %vm2073, %v2071
      %2075 = vrot.lane.b32.xlu0 %v2054, 120
      %v2076 = vpop.permute.xlu0 %2075
      %vm2078 = vcmask 654848
      %2079 = vst.msk [vmem:[%s251] sm:$0xff] %vm2078, %v2076
      %2080 = vrot.lane.b32.xlu0 %v2054, 118
      %v2081 = vpop.permute.xlu0 %2080
      %vm2083 = vcmask 786048
      %2084 = vst.msk [vmem:[%s251] sm:$0xff] %vm2083, %v2081
      %2085 = vrot.lane.b32.xlu0 %v2054, 116
      %v2086 = vpop.permute.xlu0 %2085
      %vm2088 = vcmask 917248
      %2089 = vst.msk [vmem:[%s251] sm:$0xff] %vm2088, %v2086
      %2091 = vrot.lane.b32.xlu0 %v2054, 114
      %v2092 = vpop.permute.xlu0 %2091
      %2093 = vrot.lane.b32.xlu0 %v2055, 114
      %v2094 = vpop.permute.xlu0 %2093
      %vm2095 = vcmask 932864
      %v2096 = vsel %vm2095, %v2092, %v2094
      %vm2098 = vcmask 1048448
      %2099 = vst.msk [vmem:[%s251] sm:$0xff] %vm2098, %v2096
      %2100 = vrot.lane.b32.xlu0 %v2055, 112
      %v2101 = vpop.permute.xlu0 %2100
      %2103 = vst.msk [vmem:[%s251 + $0x8] sm:$0xff] %vm2057, %v2101
      %2104 = vrot.lane.b32.xlu0 %v2055, 110
      %v2105 = vpop.permute.xlu0 %2104
      %2107 = vst.msk [vmem:[%s251 + $0x8] sm:$0xff] %vm2063, %v2105
      %2108 = vrot.lane.b32.xlu0 %v2055, 108
      %v2109 = vpop.permute.xlu0 %2108
      %2111 = vst.msk [vmem:[%s251 + $0x8] sm:$0xff] %vm2068, %v2109
      %2112 = vrot.lane.b32.xlu0 %v2055, 106
      %v2113 = vpop.permute.xlu0 %2112
      %2115 = vst.msk [vmem:[%s251 + $0x8] sm:$0xff] %vm2073, %v2113
      %2116 = vrot.lane.b32.xlu0 %v2055, 104
      %v2117 = vpop.permute.xlu0 %2116
      %2119 = vst.msk [vmem:[%s251 + $0x8] sm:$0xff] %vm2078, %v2117
      %2120 = vrot.lane.b32.xlu0 %v2055, 102
      %v2121 = vpop.permute.xlu0 %2120
      %2123 = vst.msk [vmem:[%s251 + $0x8] sm:$0xff] %vm2083, %v2121
      %2125 = vrot.lane.b32.xlu0 %v2055, 100
      %v2126 = vpop.permute.xlu0 %2125
      %2127 = vrot.lane.b32.xlu0 %v2056, 100
      %v2128 = vpop.permute.xlu0 %2127
      %vm2129 = vcmask 818176
      %v2130 = vsel %vm2129, %v2126, %v2128
      %2132 = vst.msk [vmem:[%s251 + $0x8] sm:$0xff] %vm2088, %v2130
      %2133 = vrot.lane.b32.xlu0 %v2056, 98
      %v2134 = vpop.permute.xlu0 %2133
      %2136 = vst.msk [vmem:[%s251 + $0x8] sm:$0xff] %vm2098, %v2134
      %p2137 = scmp.lt.s32.totalorder %s17, 1
      %s2138 = scalar_select %p2137, %s17, 1
      %s2139 = smul.addr %s2138, 2
      %s2140 = smul.addr %s2139, 8
      %s2141 = scalar_lea.vmem %s6, %s2140
      // Predicated region
      $region45: #{_lambda_.1} parent=43 // pred_check
        %p2142 = pneg %p166
      $region46: #{_lambda_.1} parent=43 // pred_check_branch
        %2144 = sbr.rel (%p2142) target = $region48
      $region47: #{_lambda_.1} parent=43 // pred_region
        _
      $region48: #{_lambda_.1} parent=43 // pred_fallthru
        _
    $region44: #{_lambda_.1} parent=5 // pred_fallthru
      _
    %p2145 = scmp.le.s32.totalorder 2, %s12
    // Predicated region
    $region49: #{_lambda_.1} parent=5 // pred_check
      %p2146 = pneg %p2145
    $region50: #{_lambda_.1} parent=5 // pred_check_branch
      %2148 = sbr.rel (%p2146) target = $region52
    $region51: #{_lambda_.1} parent=5 // pred_region
      %s2149 = ssub.s32 %s12, 2
      // Predicated region
      $region53: #{_lambda_.1} parent=51 // pred_check
        %p2150 = pneg %p172
      $region54: #{_lambda_.1} parent=51 // pred_check_branch
        %2152 = sbr.rel (%p2150) target = $region56
      $region55: #{_lambda_.1} parent=51 // pred_region
        %p2153 = scmp.lt.s32.totalorder %s18, 1
        %s2154 = scalar_select %p2153, %s18, 1
        %s2155 = smul.addr %s2154, 2
        %s2156 = smul.addr %s2155, 8
        %s2157 = scalar_lea.vmem %s6, %s2156
      $region56: #{_lambda_.1} parent=51 // pred_fallthru
        _
    $region52: #{_lambda_.1} parent=5 // pred_fallthru
      _
  $region6: #{_lambda_.1} parent=0 // loop_footer
    %s16 = sadd.s32 1, %s12
  $region7: #{_lambda_.1} parent=0 // loop_footer_branch
    %11 = sbr.rel target = $region3
  $region8: #{_lambda_.1} parent=0 // loop_exit
    _

</llo_original>
